<compile_context>
chip_gen: v7x
topology: tpu7x:2x2x1
jax: 0.10.0
libtpu: 0.0.40
codegen_flags: <defaults>
</compile_context>

<pallas_src>
import jax
import jax.numpy as jnp
from jax import lax
from jax.experimental import pallas as pl
from jax.experimental.pallas import tpu as pltpu

# ---- small shapes consistent with the module ----
B, L = 2, 8          # batch, sequence length
V = 32               # vocab size (embedding rows)
E = 32               # embedding dim == LSTM input_size
HID = 32             # BiLSTM_model.hidden_dim (bidirectional => per-direction HD)
HD = HID // 2        # per-direction hidden size
T = 8                # tag_num

Bp = 8               # batch padded to the 8-sublane tile
TP = 128             # classifier output padded to a full 128-lane vreg
G = 8 * HD           # fused gate width (both directions) = 128
KPAD = 8             # extra input-projection rows: [bias | zeros] (keeps K a multiple of 8)
KIN = 2 * E + KPAD   # packed input width fed to the hoisted projection


def bilstm_kernel(x2_ref, w_in_ref, w_hh_ref, h0_ref, c0_ref,
                  wcf_ref, wcb_ref, bc_ref, out_ref, h_scr):
    # --- hoisted input projection (bias folded in via the ones column of x2) ---
    # Row block t of xg holds the fwd-gate contribution of x_t and the bwd-gate
    # contribution of x_{L-1-t}; g-gate columns are pre-scaled by 2 (see make_params).
    xg = jnp.dot(x2_ref[...], w_in_ref[...],
                 preferred_element_type=jnp.float32)        # (L*Bp, 8*HD)

    w_hh = w_hh_ref[...]                                    # (2*HD, 8*HD) block-diag
    h = h0_ref[...]                                         # (Bp, 2*HD)  [h_f | h_b]
    c = c0_ref[...]                                         # (Bp, 2*HD)  [c_f | c_b]

    # --- fused bidirectional recurrence, fully unrolled (L=8, tiny live state) ---
    for t in range(L):
        gates = xg[t * Bp:(t + 1) * Bp, :] + jnp.dot(
            h, w_hh, preferred_element_type=jnp.float32)    # (Bp, 8*HD)
        a = jax.nn.sigmoid(gates)                           # ONE 128-lane EUP slab
        i_cat = a[:, 0 * HD:2 * HD]
        f_cat = a[:, 2 * HD:4 * HD]
        o_cat = a[:, 4 * HD:6 * HD]
        g_cat = 2.0 * a[:, 6 * HD:8 * HD] - 1.0             # tanh(z) = 2*sigmoid(2z) - 1
        c = f_cat * c + i_cat * g_cat
        h = o_cat * jnp.tanh(c)
        # single lane-0-aligned store, in loop-step order (no per-direction splitting)
        h_scr[t * Bp:(t + 1) * Bp, :] = h

    # --- classifier split into fwd / bwd halves; bwd time reversal handled here ---
    rep = h_scr[...]                                        # (L*Bp, 2*HD), step order
    out_f = jnp.dot(rep, wcf_ref[...],
                    preferred_element_type=jnp.float32) + bc_ref[...]   # fwd + bias
    out_b = jnp.dot(rep, wcb_ref[...],
                    preferred_element_type=jnp.float32)                 # bwd (step order)
    out_ref[...] = out_f
    for t in range(L):
        s = L - 1 - t                                       # bwd step t -> output time s
        out_ref[s * Bp:(s + 1) * Bp, :] = (
            out_ref[s * Bp:(s + 1) * Bp, :] + out_b[t * Bp:(t + 1) * Bp, :])


@jax.jit
def bilstm_forward(sents_id, p):
    """sents_id: (B, L) int32  ->  logits: (B, L, T) float32"""
    emb = p["emb"][sents_id]                                # (B, L, E) gather
    x_tm = jnp.swapaxes(emb, 0, 1)                          # (L, B, E) time-major
    x_tm = jnp.pad(x_tm, ((0, 0), (0, Bp - B), (0, 0)))     # pad batch to sublane tile
    # fwd input at loop step t is x_t; bwd input at step t is x_{L-1-t}
    x2 = jnp.concatenate([x_tm, x_tm[::-1]], axis=-1).reshape(L * Bp, 2 * E)
    # ones column (bias row of w_in) + zero padding to keep K a multiple of 8
    pad_cols = jnp.concatenate(
        [jnp.ones((L * Bp, 1), jnp.float32),
         jnp.zeros((L * Bp, KPAD - 1), jnp.float32)], axis=-1)
    x2b = jnp.concatenate([x2, pad_cols], axis=-1)          # (L*Bp, KIN)

    out = pl.pallas_call(
        bilstm_kernel,
        out_shape=jax.ShapeDtypeStruct((L * Bp, TP), jnp.float32),
        scratch_shapes=[pltpu.VMEM((L * Bp, 2 * HD), jnp.float32)],
        cost_estimate=pl.CostEstimate(flops=2_700_000, transcendentals=10_240,
                                      bytes_accessed=135_000),
    )(x2b, p["w_inb"], p["w_hh_s"], p["h0_pad"], p["c0_pad"],
      p["wc_f"], p["wc_b"], p["b_cls_pad"])

    # (L*Bp, TP) -> (L, Bp, TP) -> drop padding -> (B, L, T)   (glue, inside the jit)
    out = out.reshape(L, Bp, TP)[:, :B, :T]
    return jnp.swapaxes(out, 0, 1)


# ------------------------- pure-JAX reference -------------------------
def _lstm_dir_ref(x_tm, h0, c0, wih, whh, bih, bhh):
    # x_tm: (L, B, E); weights in PyTorch layout: wih (4HD, E), whh (4HD, HD)
    def step(carry, x_t):
        h, c = carry
        gates = x_t @ wih.T + h @ whh.T + bih + bhh
        i, f, g, o = jnp.split(gates, 4, axis=-1)
        i = jax.nn.sigmoid(i); f = jax.nn.sigmoid(f)
        g = jnp.tanh(g); o = jax.nn.sigmoid(o)
        c = f * c + i * g
        h = o * jnp.tanh(c)
        return (h, c), h
    _, hs = lax.scan(step, (h0, c0), x_tm)
    return hs                                               # (L, B, HD)


def reference_forward(sents_id, p):
    x = p["emb"][sents_id]                                  # (B, L, E)
    x_tm = jnp.swapaxes(x, 0, 1)                            # (L, B, E)
    hf = _lstm_dir_ref(x_tm, p["h0_f"], p["c0_f"],
                       p["wih_f"], p["whh_f"], p["bih_f"], p["bhh_f"])
    hb = _lstm_dir_ref(x_tm[::-1], p["h0_b"], p["c0_b"],
                       p["wih_b"], p["whh_b"], p["bih_b"], p["bhh_b"])[::-1]
    rep = jnp.concatenate([hf, hb], axis=-1)                # (L, B, HID)
    logits = rep @ p["w_cls"].T + p["bias_cls"]             # (L, B, T)
    return jnp.swapaxes(logits, 0, 1)                       # (B, L, T)


# ------------------------- parameter construction -------------------------
def make_params(key):
    ks = jax.random.split(key, 16)
    n = lambda k, s, scale=0.2: (scale * jax.random.normal(k, s)).astype(jnp.float32)

    emb = n(ks[0], (V, E), 1.0)                # nn.Embedding.from_pretrained weights
    wih_f = n(ks[1], (4 * HD, E));  whh_f = n(ks[2], (4 * HD, HD))
    bih_f = n(ks[3], (4 * HD,));    bhh_f = n(ks[4], (4 * HD,))
    wih_b = n(ks[5], (4 * HD, E));  whh_b = n(ks[6], (4 * HD, HD))
    bih_b = n(ks[7], (4 * HD,));    bhh_b = n(ks[8], (4 * HD,))
    w_cls = n(ks[9], (T, HID));     bias_cls = n(ks[10], (T,))
    # init_hidden(): torch.randn for h0 / c0 (num_layers * num_directions = 2)
    h0_f = n(ks[11], (B, HD), 1.0); c0_f = n(ks[12], (B, HD), 1.0)
    h0_b = n(ks[13], (B, HD), 1.0); c0_b = n(ks[14], (B, HD), 1.0)

    # ---- kernel-friendly fused packing ----
    # Fused gate column order (HD-wide blocks): [i_f, i_b, f_f, f_b, o_f, o_b, g_f, g_b]
    i_s, f_s = slice(0, HD), slice(HD, 2 * HD)
    g_s, o_s = slice(2 * HD, 3 * HD), slice(3 * HD, 4 * HD)   # PyTorch order i,f,g,o

    def gate_blocks(w):          # (4HD, X) -> per-gate transposed blocks in i,f,o,g order
        return [w[i_s].T, w[f_s].T, w[o_s].T, w[g_s].T]

    wx_f, wx_b = gate_blocks(wih_f), gate_blocks(wih_b)       # each (E, HD)
    wh_f, wh_b = gate_blocks(whh_f), gate_blocks(whh_b)       # each (HD, HD)
    bsum_f, bsum_b = bih_f + bhh_f, bih_b + bhh_b
    bg_f = [bsum_f[i_s], bsum_f[f_s], bsum_f[o_s], bsum_f[g_s]]
    bg_b = [bsum_b[i_s], bsum_b[f_s], bsum_b[o_s], bsum_b[g_s]]

    z_e = jnp.zeros((E, HD), jnp.float32)
    z_h = jnp.zeros((HD, HD), jnp.float32)

    # W_in: rows 0:E consume x_t (fwd gates only), rows E:2E consume x_{L-1-t} (bwd only)
    w_in_top = jnp.concatenate(
        [wx_f[0], z_e, wx_f[1], z_e, wx_f[2], z_e, wx_f[3], z_e], axis=1)
    w_in_bot = jnp.concatenate(
        [z_e, wx_b[0], z_e, wx_b[1], z_e, wx_b[2], z_e, wx_b[3]], axis=1)
    w_in = jnp.concatenate([w_in_top, w_in_bot], axis=0)      # (2E, 8*HD)

    # Block-diagonal recurrent weight: rows 0:HD = h_f -> fwd cols, HD:2HD = h_b -> bwd cols
    w_hh_top = jnp.concatenate(
        [wh_f[0], z_h, wh_f[1], z_h, wh_f[2], z_h, wh_f[3], z_h], axis=1)
    w_hh_bot = jnp.concatenate(
        [z_h, wh_b[0], z_h, wh_b[1], z_h, wh_b[2], z_h, wh_b[3]], axis=1)
    w_hh = jnp.concatenate([w_hh_top, w_hh_bot], axis=0)      # (2*HD, 8*HD)

    b_g = jnp.concatenate(
        [bg_f[0], bg_b[0], bg_f[1], bg_b[1],
         bg_f[2], bg_b[2], bg_f[3], bg_b[3]])                 # (8*HD,)

    # Scale g-gate columns by 2 so the kernel can use a single sigmoid slab and recover
    # tanh(z) as 2*sigmoid(2z)-1; fold the (scaled) bias into an extra W_in row (the
    # wrapper appends a matching ones column), plus zero rows to keep K a multiple of 8.
    gscale = jnp.concatenate([jnp.ones((6 * HD,), jnp.float32),
                              jnp.full((2 * HD,), 2.0, jnp.float32)])
    bias_block = jnp.concatenate([(b_g * gscale).reshape(1, G),
                                  jnp.zeros((KPAD - 1, G), jnp.float32)], axis=0)
    w_inb = jnp.concatenate([w_in * gscale, bias_block], axis=0)   # (KIN, 8*HD)
    w_hh_s = w_hh * gscale                                         # (2*HD, 8*HD)

    # Classifier split into fwd/bwd halves (unused rows zeroed so the kernel needs no
    # lane slicing of rep), padded to 128 output lanes for lane-dense stores.
    wcT = w_cls.T                                                  # (2*HD, T)
    z_t = jnp.zeros((HD, T), jnp.float32)
    wc_f = jnp.pad(jnp.concatenate([wcT[:HD], z_t], axis=0), ((0, 0), (0, TP - T)))
    wc_b = jnp.pad(jnp.concatenate([z_t, wcT[HD:]], axis=0), ((0, 0), (0, TP - T)))
    b_cls_pad = jnp.pad(bias_cls, (0, TP - T)).reshape(1, TP)

    h0_pad = jnp.pad(jnp.concatenate([h0_f, h0_b], axis=-1), ((0, Bp - B), (0, 0)))
    c0_pad = jnp.pad(jnp.concatenate([c0_f, c0_b], axis=-1), ((0, Bp - B), (0, 0)))

    return dict(
        emb=emb,
        # raw PyTorch-layout params (used by the reference)
        wih_f=wih_f, whh_f=whh_f, bih_f=bih_f, bhh_f=bhh_f,
        wih_b=wih_b, whh_b=whh_b, bih_b=bih_b, bhh_b=bhh_b,
        w_cls=w_cls, bias_cls=bias_cls,
        h0_f=h0_f, c0_f=c0_f, h0_b=h0_b, c0_b=c0_b,
        # fused kernel params
        w_inb=w_inb, w_hh_s=w_hh_s,
        wc_f=wc_f, wc_b=wc_b, b_cls_pad=b_cls_pad,
        h0_pad=h0_pad, c0_pad=c0_pad,
    )


if __name__ == "__main__":
    key = jax.random.PRNGKey(0)
    k_par, k_ids = jax.random.split(key)
    params = make_params(k_par)
    sents_id = jax.random.randint(k_ids, (B, L), 0, V, dtype=jnp.int32)

    logits = bilstm_forward(sents_id, params)
    logits = jax.block_until_ready(logits)

    ref = reference_forward(sents_id, params)
    assert logits.shape == (B, L, T)
    assert jnp.allclose(logits, ref, atol=1e-4, rtol=1e-4), (
        f"max abs diff = {jnp.max(jnp.abs(logits - ref))}")

    print("KERNEL_OK")
</pallas_src>

<mosaic_0001>
module attributes {stable_mosaic.version = 11 : i64} {
  func.func @bilstm_kernel(%arg0: memref<64x72xf32, #tpu.memory_space<vmem>>, %arg1: memref<72x128xf32, #tpu.memory_space<vmem>>, %arg2: memref<32x128xf32, #tpu.memory_space<vmem>>, %arg3: memref<8x32xf32, #tpu.memory_space<vmem>>, %arg4: memref<8x32xf32, #tpu.memory_space<vmem>>, %arg5: memref<32x128xf32, #tpu.memory_space<vmem>>, %arg6: memref<32x128xf32, #tpu.memory_space<vmem>>, %arg7: memref<1x128xf32, #tpu.memory_space<vmem>>, %arg8: memref<64x128xf32, #tpu.memory_space<vmem>>, %arg9: memref<64x32xf32, #tpu.memory_space<vmem>>) attributes {dimension_semantics = [], scalar_prefetch = 0 : i64, scratch_operands = 1 : i64, tpu.core_type = #tpu.core_type<tc>} {
    %c0 = arith.constant 0 : index
    %c0_0 = arith.constant 0 : index
    %0 = vector.load %arg0[%c0, %c0_0] : memref<64x72xf32, #tpu.memory_space<vmem>>, vector<64x72xf32>
    %c0_1 = arith.constant 0 : index
    %c0_2 = arith.constant 0 : index
    %1 = vector.load %arg1[%c0_1, %c0_2] : memref<72x128xf32, #tpu.memory_space<vmem>>, vector<72x128xf32>
    %cst = arith.constant dense<0.000000e+00> : vector<64x128xf32>
    %2 = tpu.matmul %0, %1, %cst {dimension_numbers = #tpu.dot_dimension_numbers<[1], [0], [0], [1], [0, 0, 1, 1], [], []>} : vector<64x72xf32>, vector<72x128xf32>, vector<64x128xf32> -> vector<64x128xf32>
    %c0_3 = arith.constant 0 : index
    %c0_4 = arith.constant 0 : index
    %3 = vector.load %arg2[%c0_3, %c0_4] : memref<32x128xf32, #tpu.memory_space<vmem>>, vector<32x128xf32>
    %c0_5 = arith.constant 0 : index
    %c0_6 = arith.constant 0 : index
    %4 = vector.load %arg3[%c0_5, %c0_6] : memref<8x32xf32, #tpu.memory_space<vmem>>, vector<8x32xf32>
    %c0_7 = arith.constant 0 : index
    %c0_8 = arith.constant 0 : index
    %5 = vector.load %arg4[%c0_7, %c0_8] : memref<8x32xf32, #tpu.memory_space<vmem>>, vector<8x32xf32>
    %6 = vector.extract_strided_slice %2 {offsets = [0, 0], sizes = [8, 128], strides = [1, 1]} : vector<64x128xf32> to vector<8x128xf32>
    %cst_9 = arith.constant dense<0.000000e+00> : vector<8x128xf32>
    %7 = tpu.matmul %4, %3, %cst_9 {dimension_numbers = #tpu.dot_dimension_numbers<[1], [0], [0], [1], [0, 0, 1, 1], [], []>} : vector<8x32xf32>, vector<32x128xf32>, vector<8x128xf32> -> vector<8x128xf32>
    %8 = arith.addf %6, %7 : vector<8x128xf32>
    %9 = arith.negf %8 : vector<8x128xf32>
    %10 = math.exp %9 : vector<8x128xf32>
    %cst_10 = arith.constant 1.000000e+00 : f32
    %11 = vector.broadcast %cst_10 : f32 to vector<8x128xf32>
    %12 = arith.addf %11, %10 : vector<8x128xf32>
    %13 = arith.divf %11, %12 : vector<8x128xf32>
    %14 = vector.extract_strided_slice %13 {offsets = [0, 0], sizes = [8, 32], strides = [1, 1]} : vector<8x128xf32> to vector<8x32xf32>
    %15 = vector.extract_strided_slice %13 {offsets = [0, 32], sizes = [8, 32], strides = [1, 1]} : vector<8x128xf32> to vector<8x32xf32>
    %16 = vector.extract_strided_slice %13 {offsets = [0, 64], sizes = [8, 32], strides = [1, 1]} : vector<8x128xf32> to vector<8x32xf32>
    %17 = vector.extract_strided_slice %13 {offsets = [0, 96], sizes = [8, 32], strides = [1, 1]} : vector<8x128xf32> to vector<8x32xf32>
    %cst_11 = arith.constant 2.000000e+00 : f32
    %18 = vector.broadcast %cst_11 : f32 to vector<8x32xf32>
    %19 = arith.mulf %18, %17 : vector<8x32xf32>
    %cst_12 = arith.constant 1.000000e+00 : f32
    %20 = vector.broadcast %cst_12 : f32 to vector<8x32xf32>
    %21 = arith.subf %19, %20 : vector<8x32xf32>
    %22 = arith.mulf %15, %5 : vector<8x32xf32>
    %23 = arith.mulf %14, %21 : vector<8x32xf32>
    %24 = arith.addf %22, %23 : vector<8x32xf32>
    %25 = math.tanh %24 : vector<8x32xf32>
    %26 = arith.mulf %16, %25 : vector<8x32xf32>
    %c0_13 = arith.constant 0 : index
    %c0_14 = arith.constant 0 : index
    %27 = vector.load %arg9[%c0_13, %c0_14] : memref<64x32xf32, #tpu.memory_space<vmem>>, vector<8x32xf32>
    tpu.vector_store %arg9[%c0_13, %c0_14], %26 {strides = array<i32>} : memref<64x32xf32, #tpu.memory_space<vmem>>, vector<8x32xf32>,
    %28 = vector.extract_strided_slice %2 {offsets = [8, 0], sizes = [8, 128], strides = [1, 1]} : vector<64x128xf32> to vector<8x128xf32>
    %cst_15 = arith.constant dense<0.000000e+00> : vector<8x128xf32>
    %29 = tpu.matmul %26, %3, %cst_15 {dimension_numbers = #tpu.dot_dimension_numbers<[1], [0], [0], [1], [0, 0, 1, 1], [], []>} : vector<8x32xf32>, vector<32x128xf32>, vector<8x128xf32> -> vector<8x128xf32>
    %30 = arith.addf %28, %29 : vector<8x128xf32>
    %31 = arith.negf %30 : vector<8x128xf32>
    %32 = math.exp %31 : vector<8x128xf32>
    %cst_16 = arith.constant 1.000000e+00 : f32
    %33 = vector.broadcast %cst_16 : f32 to vector<8x128xf32>
    %34 = arith.addf %33, %32 : vector<8x128xf32>
    %35 = arith.divf %33, %34 : vector<8x128xf32>
    %36 = vector.extract_strided_slice %35 {offsets = [0, 0], sizes = [8, 32], strides = [1, 1]} : vector<8x128xf32> to vector<8x32xf32>
    %37 = vector.extract_strided_slice %35 {offsets = [0, 32], sizes = [8, 32], strides = [1, 1]} : vector<8x128xf32> to vector<8x32xf32>
    %38 = vector.extract_strided_slice %35 {offsets = [0, 64], sizes = [8, 32], strides = [1, 1]} : vector<8x128xf32> to vector<8x32xf32>
    %39 = vector.extract_strided_slice %35 {offsets = [0, 96], sizes = [8, 32], strides = [1, 1]} : vector<8x128xf32> to vector<8x32xf32>
    %cst_17 = arith.constant 2.000000e+00 : f32
    %40 = vector.broadcast %cst_17 : f32 to vector<8x32xf32>
    %41 = arith.mulf %40, %39 : vector<8x32xf32>
    %cst_18 = arith.constant 1.000000e+00 : f32
    %42 = vector.broadcast %cst_18 : f32 to vector<8x32xf32>
    %43 = arith.subf %41, %42 : vector<8x32xf32>
    %44 = arith.mulf %37, %24 : vector<8x32xf32>
    %45 = arith.mulf %36, %43 : vector<8x32xf32>
    %46 = arith.addf %44, %45 : vector<8x32xf32>
    %47 = math.tanh %46 : vector<8x32xf32>
    %48 = arith.mulf %38, %47 : vector<8x32xf32>
    %c8 = arith.constant 8 : index
    %c0_19 = arith.constant 0 : index
    %49 = vector.load %arg9[%c8, %c0_19] : memref<64x32xf32, #tpu.memory_space<vmem>>, vector<8x32xf32>
    tpu.vector_store %arg9[%c8, %c0_19], %48 {strides = array<i32>} : memref<64x32xf32, #tpu.memory_space<vmem>>, vector<8x32xf32>,
    %50 = vector.extract_strided_slice %2 {offsets = [16, 0], sizes = [8, 128], strides = [1, 1]} : vector<64x128xf32> to vector<8x128xf32>
    %cst_20 = arith.constant dense<0.000000e+00> : vector<8x128xf32>
    %51 = tpu.matmul %48, %3, %cst_20 {dimension_numbers = #tpu.dot_dimension_numbers<[1], [0], [0], [1], [0, 0, 1, 1], [], []>} : vector<8x32xf32>, vector<32x128xf32>, vector<8x128xf32> -> vector<8x128xf32>
    %52 = arith.addf %50, %51 : vector<8x128xf32>
    %53 = arith.negf %52 : vector<8x128xf32>
    %54 = math.exp %53 : vector<8x128xf32>
    %cst_21 = arith.constant 1.000000e+00 : f32
    %55 = vector.broadcast %cst_21 : f32 to vector<8x128xf32>
    %56 = arith.addf %55, %54 : vector<8x128xf32>
    %57 = arith.divf %55, %56 : vector<8x128xf32>
    %58 = vector.extract_strided_slice %57 {offsets = [0, 0], sizes = [8, 32], strides = [1, 1]} : vector<8x128xf32> to vector<8x32xf32>
    %59 = vector.extract_strided_slice %57 {offsets = [0, 32], sizes = [8, 32], strides = [1, 1]} : vector<8x128xf32> to vector<8x32xf32>
    %60 = vector.extract_strided_slice %57 {offsets = [0, 64], sizes = [8, 32], strides = [1, 1]} : vector<8x128xf32> to vector<8x32xf32>
    %61 = vector.extract_strided_slice %57 {offsets = [0, 96], sizes = [8, 32], strides = [1, 1]} : vector<8x128xf32> to vector<8x32xf32>
    %cst_22 = arith.constant 2.000000e+00 : f32
    %62 = vector.broadcast %cst_22 : f32 to vector<8x32xf32>
    %63 = arith.mulf %62, %61 : vector<8x32xf32>
    %cst_23 = arith.constant 1.000000e+00 : f32
    %64 = vector.broadcast %cst_23 : f32 to vector<8x32xf32>
    %65 = arith.subf %63, %64 : vector<8x32xf32>
    %66 = arith.mulf %59, %46 : vector<8x32xf32>
    %67 = arith.mulf %58, %65 : vector<8x32xf32>
    %68 = arith.addf %66, %67 : vector<8x32xf32>
    %69 = math.tanh %68 : vector<8x32xf32>
    %70 = arith.mulf %60, %69 : vector<8x32xf32>
    %c16 = arith.constant 16 : index
    %c0_24 = arith.constant 0 : index
    %71 = vector.load %arg9[%c16, %c0_24] : memref<64x32xf32, #tpu.memory_space<vmem>>, vector<8x32xf32>
    tpu.vector_store %arg9[%c16, %c0_24], %70 {strides = array<i32>} : memref<64x32xf32, #tpu.memory_space<vmem>>, vector<8x32xf32>,
    %72 = vector.extract_strided_slice %2 {offsets = [24, 0], sizes = [8, 128], strides = [1, 1]} : vector<64x128xf32> to vector<8x128xf32>
    %cst_25 = arith.constant dense<0.000000e+00> : vector<8x128xf32>
    %73 = tpu.matmul %70, %3, %cst_25 {dimension_numbers = #tpu.dot_dimension_numbers<[1], [0], [0], [1], [0, 0, 1, 1], [], []>} : vector<8x32xf32>, vector<32x128xf32>, vector<8x128xf32> -> vector<8x128xf32>
    %74 = arith.addf %72, %73 : vector<8x128xf32>
    %75 = arith.negf %74 : vector<8x128xf32>
    %76 = math.exp %75 : vector<8x128xf32>
    %cst_26 = arith.constant 1.000000e+00 : f32
    %77 = vector.broadcast %cst_26 : f32 to vector<8x128xf32>
    %78 = arith.addf %77, %76 : vector<8x128xf32>
    %79 = arith.divf %77, %78 : vector<8x128xf32>
    %80 = vector.extract_strided_slice %79 {offsets = [0, 0], sizes = [8, 32], strides = [1, 1]} : vector<8x128xf32> to vector<8x32xf32>
    %81 = vector.extract_strided_slice %79 {offsets = [0, 32], sizes = [8, 32], strides = [1, 1]} : vector<8x128xf32> to vector<8x32xf32>
    %82 = vector.extract_strided_slice %79 {offsets = [0, 64], sizes = [8, 32], strides = [1, 1]} : vector<8x128xf32> to vector<8x32xf32>
    %83 = vector.extract_strided_slice %79 {offsets = [0, 96], sizes = [8, 32], strides = [1, 1]} : vector<8x128xf32> to vector<8x32xf32>
    %cst_27 = arith.constant 2.000000e+00 : f32
    %84 = vector.broadcast %cst_27 : f32 to vector<8x32xf32>
    %85 = arith.mulf %84, %83 : vector<8x32xf32>
    %cst_28 = arith.constant 1.000000e+00 : f32
    %86 = vector.broadcast %cst_28 : f32 to vector<8x32xf32>
    %87 = arith.subf %85, %86 : vector<8x32xf32>
    %88 = arith.mulf %81, %68 : vector<8x32xf32>
    %89 = arith.mulf %80, %87 : vector<8x32xf32>
    %90 = arith.addf %88, %89 : vector<8x32xf32>
    %91 = math.tanh %90 : vector<8x32xf32>
    %92 = arith.mulf %82, %91 : vector<8x32xf32>
    %c24 = arith.constant 24 : index
    %c0_29 = arith.constant 0 : index
    %93 = vector.load %arg9[%c24, %c0_29] : memref<64x32xf32, #tpu.memory_space<vmem>>, vector<8x32xf32>
    tpu.vector_store %arg9[%c24, %c0_29], %92 {strides = array<i32>} : memref<64x32xf32, #tpu.memory_space<vmem>>, vector<8x32xf32>,
    %94 = vector.extract_strided_slice %2 {offsets = [32, 0], sizes = [8, 128], strides = [1, 1]} : vector<64x128xf32> to vector<8x128xf32>
    %cst_30 = arith.constant dense<0.000000e+00> : vector<8x128xf32>
    %95 = tpu.matmul %92, %3, %cst_30 {dimension_numbers = #tpu.dot_dimension_numbers<[1], [0], [0], [1], [0, 0, 1, 1], [], []>} : vector<8x32xf32>, vector<32x128xf32>, vector<8x128xf32> -> vector<8x128xf32>
    %96 = arith.addf %94, %95 : vector<8x128xf32>
    %97 = arith.negf %96 : vector<8x128xf32>
    %98 = math.exp %97 : vector<8x128xf32>
    %cst_31 = arith.constant 1.000000e+00 : f32
    %99 = vector.broadcast %cst_31 : f32 to vector<8x128xf32>
    %100 = arith.addf %99, %98 : vector<8x128xf32>
    %101 = arith.divf %99, %100 : vector<8x128xf32>
    %102 = vector.extract_strided_slice %101 {offsets = [0, 0], sizes = [8, 32], strides = [1, 1]} : vector<8x128xf32> to vector<8x32xf32>
    %103 = vector.extract_strided_slice %101 {offsets = [0, 32], sizes = [8, 32], strides = [1, 1]} : vector<8x128xf32> to vector<8x32xf32>
    %104 = vector.extract_strided_slice %101 {offsets = [0, 64], sizes = [8, 32], strides = [1, 1]} : vector<8x128xf32> to vector<8x32xf32>
    %105 = vector.extract_strided_slice %101 {offsets = [0, 96], sizes = [8, 32], strides = [1, 1]} : vector<8x128xf32> to vector<8x32xf32>
    %cst_32 = arith.constant 2.000000e+00 : f32
    %106 = vector.broadcast %cst_32 : f32 to vector<8x32xf32>
    %107 = arith.mulf %106, %105 : vector<8x32xf32>
    %cst_33 = arith.constant 1.000000e+00 : f32
    %108 = vector.broadcast %cst_33 : f32 to vector<8x32xf32>
    %109 = arith.subf %107, %108 : vector<8x32xf32>
    %110 = arith.mulf %103, %90 : vector<8x32xf32>
    %111 = arith.mulf %102, %109 : vector<8x32xf32>
    %112 = arith.addf %110, %111 : vector<8x32xf32>
    %113 = math.tanh %112 : vector<8x32xf32>
    %114 = arith.mulf %104, %113 : vector<8x32xf32>
    %c32 = arith.constant 32 : index
    %c0_34 = arith.constant 0 : index
    %115 = vector.load %arg9[%c32, %c0_34] : memref<64x32xf32, #tpu.memory_space<vmem>>, vector<8x32xf32>
    tpu.vector_store %arg9[%c32, %c0_34], %114 {strides = array<i32>} : memref<64x32xf32, #tpu.memory_space<vmem>>, vector<8x32xf32>,
    %116 = vector.extract_strided_slice %2 {offsets = [40, 0], sizes = [8, 128], strides = [1, 1]} : vector<64x128xf32> to vector<8x128xf32>
    %cst_35 = arith.constant dense<0.000000e+00> : vector<8x128xf32>
    %117 = tpu.matmul %114, %3, %cst_35 {dimension_numbers = #tpu.dot_dimension_numbers<[1], [0], [0], [1], [0, 0, 1, 1], [], []>} : vector<8x32xf32>, vector<32x128xf32>, vector<8x128xf32> -> vector<8x128xf32>
    %118 = arith.addf %116, %117 : vector<8x128xf32>
    %119 = arith.negf %118 : vector<8x128xf32>
    %120 = math.exp %119 : vector<8x128xf32>
    %cst_36 = arith.constant 1.000000e+00 : f32
    %121 = vector.broadcast %cst_36 : f32 to vector<8x128xf32>
    %122 = arith.addf %121, %120 : vector<8x128xf32>
    %123 = arith.divf %121, %122 : vector<8x128xf32>
    %124 = vector.extract_strided_slice %123 {offsets = [0, 0], sizes = [8, 32], strides = [1, 1]} : vector<8x128xf32> to vector<8x32xf32>
    %125 = vector.extract_strided_slice %123 {offsets = [0, 32], sizes = [8, 32], strides = [1, 1]} : vector<8x128xf32> to vector<8x32xf32>
    %126 = vector.extract_strided_slice %123 {offsets = [0, 64], sizes = [8, 32], strides = [1, 1]} : vector<8x128xf32> to vector<8x32xf32>
    %127 = vector.extract_strided_slice %123 {offsets = [0, 96], sizes = [8, 32], strides = [1, 1]} : vector<8x128xf32> to vector<8x32xf32>
    %cst_37 = arith.constant 2.000000e+00 : f32
    %128 = vector.broadcast %cst_37 : f32 to vector<8x32xf32>
    %129 = arith.mulf %128, %127 : vector<8x32xf32>
    %cst_38 = arith.constant 1.000000e+00 : f32
    %130 = vector.broadcast %cst_38 : f32 to vector<8x32xf32>
    %131 = arith.subf %129, %130 : vector<8x32xf32>
    %132 = arith.mulf %125, %112 : vector<8x32xf32>
    %133 = arith.mulf %124, %131 : vector<8x32xf32>
    %134 = arith.addf %132, %133 : vector<8x32xf32>
    %135 = math.tanh %134 : vector<8x32xf32>
    %136 = arith.mulf %126, %135 : vector<8x32xf32>
    %c40 = arith.constant 40 : index
    %c0_39 = arith.constant 0 : index
    %137 = vector.load %arg9[%c40, %c0_39] : memref<64x32xf32, #tpu.memory_space<vmem>>, vector<8x32xf32>
    tpu.vector_store %arg9[%c40, %c0_39], %136 {strides = array<i32>} : memref<64x32xf32, #tpu.memory_space<vmem>>, vector<8x32xf32>,
    %138 = vector.extract_strided_slice %2 {offsets = [48, 0], sizes = [8, 128], strides = [1, 1]} : vector<64x128xf32> to vector<8x128xf32>
    %cst_40 = arith.constant dense<0.000000e+00> : vector<8x128xf32>
    %139 = tpu.matmul %136, %3, %cst_40 {dimension_numbers = #tpu.dot_dimension_numbers<[1], [0], [0], [1], [0, 0, 1, 1], [], []>} : vector<8x32xf32>, vector<32x128xf32>, vector<8x128xf32> -> vector<8x128xf32>
    %140 = arith.addf %138, %139 : vector<8x128xf32>
    %141 = arith.negf %140 : vector<8x128xf32>
    %142 = math.exp %141 : vector<8x128xf32>
    %cst_41 = arith.constant 1.000000e+00 : f32
    %143 = vector.broadcast %cst_41 : f32 to vector<8x128xf32>
    %144 = arith.addf %143, %142 : vector<8x128xf32>
    %145 = arith.divf %143, %144 : vector<8x128xf32>
    %146 = vector.extract_strided_slice %145 {offsets = [0, 0], sizes = [8, 32], strides = [1, 1]} : vector<8x128xf32> to vector<8x32xf32>
    %147 = vector.extract_strided_slice %145 {offsets = [0, 32], sizes = [8, 32], strides = [1, 1]} : vector<8x128xf32> to vector<8x32xf32>
    %148 = vector.extract_strided_slice %145 {offsets = [0, 64], sizes = [8, 32], strides = [1, 1]} : vector<8x128xf32> to vector<8x32xf32>
    %149 = vector.extract_strided_slice %145 {offsets = [0, 96], sizes = [8, 32], strides = [1, 1]} : vector<8x128xf32> to vector<8x32xf32>
    %cst_42 = arith.constant 2.000000e+00 : f32
    %150 = vector.broadcast %cst_42 : f32 to vector<8x32xf32>
    %151 = arith.mulf %150, %149 : vector<8x32xf32>
    %cst_43 = arith.constant 1.000000e+00 : f32
    %152 = vector.broadcast %cst_43 : f32 to vector<8x32xf32>
    %153 = arith.subf %151, %152 : vector<8x32xf32>
    %154 = arith.mulf %147, %134 : vector<8x32xf32>
    %155 = arith.mulf %146, %153 : vector<8x32xf32>
    %156 = arith.addf %154, %155 : vector<8x32xf32>
    %157 = math.tanh %156 : vector<8x32xf32>
    %158 = arith.mulf %148, %157 : vector<8x32xf32>
    %c48 = arith.constant 48 : index
    %c0_44 = arith.constant 0 : index
    %159 = vector.load %arg9[%c48, %c0_44] : memref<64x32xf32, #tpu.memory_space<vmem>>, vector<8x32xf32>
    tpu.vector_store %arg9[%c48, %c0_44], %158 {strides = array<i32>} : memref<64x32xf32, #tpu.memory_space<vmem>>, vector<8x32xf32>,
    %160 = vector.extract_strided_slice %2 {offsets = [56, 0], sizes = [8, 128], strides = [1, 1]} : vector<64x128xf32> to vector<8x128xf32>
    %cst_45 = arith.constant dense<0.000000e+00> : vector<8x128xf32>
    %161 = tpu.matmul %158, %3, %cst_45 {dimension_numbers = #tpu.dot_dimension_numbers<[1], [0], [0], [1], [0, 0, 1, 1], [], []>} : vector<8x32xf32>, vector<32x128xf32>, vector<8x128xf32> -> vector<8x128xf32>
    %162 = arith.addf %160, %161 : vector<8x128xf32>
    %163 = arith.negf %162 : vector<8x128xf32>
    %164 = math.exp %163 : vector<8x128xf32>
    %cst_46 = arith.constant 1.000000e+00 : f32
    %165 = vector.broadcast %cst_46 : f32 to vector<8x128xf32>
    %166 = arith.addf %165, %164 : vector<8x128xf32>
    %167 = arith.divf %165, %166 : vector<8x128xf32>
    %168 = vector.extract_strided_slice %167 {offsets = [0, 0], sizes = [8, 32], strides = [1, 1]} : vector<8x128xf32> to vector<8x32xf32>
    %169 = vector.extract_strided_slice %167 {offsets = [0, 32], sizes = [8, 32], strides = [1, 1]} : vector<8x128xf32> to vector<8x32xf32>
    %170 = vector.extract_strided_slice %167 {offsets = [0, 64], sizes = [8, 32], strides = [1, 1]} : vector<8x128xf32> to vector<8x32xf32>
    %171 = vector.extract_strided_slice %167 {offsets = [0, 96], sizes = [8, 32], strides = [1, 1]} : vector<8x128xf32> to vector<8x32xf32>
    %cst_47 = arith.constant 2.000000e+00 : f32
    %172 = vector.broadcast %cst_47 : f32 to vector<8x32xf32>
    %173 = arith.mulf %172, %171 : vector<8x32xf32>
    %cst_48 = arith.constant 1.000000e+00 : f32
    %174 = vector.broadcast %cst_48 : f32 to vector<8x32xf32>
    %175 = arith.subf %173, %174 : vector<8x32xf32>
    %176 = arith.mulf %169, %156 : vector<8x32xf32>
    %177 = arith.mulf %168, %175 : vector<8x32xf32>
    %178 = arith.addf %176, %177 : vector<8x32xf32>
    %179 = math.tanh %178 : vector<8x32xf32>
    %180 = arith.mulf %170, %179 : vector<8x32xf32>
    %c56 = arith.constant 56 : index
    %c0_49 = arith.constant 0 : index
    %181 = vector.load %arg9[%c56, %c0_49] : memref<64x32xf32, #tpu.memory_space<vmem>>, vector<8x32xf32>
    tpu.vector_store %arg9[%c56, %c0_49], %180 {strides = array<i32>} : memref<64x32xf32, #tpu.memory_space<vmem>>, vector<8x32xf32>,
    %c0_50 = arith.constant 0 : index
    %c0_51 = arith.constant 0 : index
    %182 = vector.load %arg9[%c0_50, %c0_51] : memref<64x32xf32, #tpu.memory_space<vmem>>, vector<64x32xf32>
    %c0_52 = arith.constant 0 : index
    %c0_53 = arith.constant 0 : index
    %183 = vector.load %arg5[%c0_52, %c0_53] : memref<32x128xf32, #tpu.memory_space<vmem>>, vector<32x128xf32>
    %cst_54 = arith.constant dense<0.000000e+00> : vector<64x128xf32>
    %184 = tpu.matmul %182, %183, %cst_54 {dimension_numbers = #tpu.dot_dimension_numbers<[1], [0], [0], [1], [0, 0, 1, 1], [], []>} : vector<64x32xf32>, vector<32x128xf32>, vector<64x128xf32> -> vector<64x128xf32>
    %c0_55 = arith.constant 0 : index
    %c0_56 = arith.constant 0 : index
    %185 = vector.load %arg7[%c0_55, %c0_56] : memref<1x128xf32, #tpu.memory_space<vmem>>, vector<1x128xf32>
    %186 = vector.broadcast %185 : vector<1x128xf32> to vector<64x128xf32>
    %187 = arith.addf %184, %186 : vector<64x128xf32>
    %c0_57 = arith.constant 0 : index
    %c0_58 = arith.constant 0 : index
    %188 = vector.load %arg6[%c0_57, %c0_58] : memref<32x128xf32, #tpu.memory_space<vmem>>, vector<32x128xf32>
    %cst_59 = arith.constant dense<0.000000e+00> : vector<64x128xf32>
    %189 = tpu.matmul %182, %188, %cst_59 {dimension_numbers = #tpu.dot_dimension_numbers<[1], [0], [0], [1], [0, 0, 1, 1], [], []>} : vector<64x32xf32>, vector<32x128xf32>, vector<64x128xf32> -> vector<64x128xf32>
    %c0_60 = arith.constant 0 : index
    %c0_61 = arith.constant 0 : index
    %190 = vector.load %arg8[%c0_60, %c0_61] : memref<64x128xf32, #tpu.memory_space<vmem>>, vector<64x128xf32>
    tpu.vector_store %arg8[%c0_60, %c0_61], %187 {strides = array<i32>} : memref<64x128xf32, #tpu.memory_space<vmem>>, vector<64x128xf32>,
    %c56_62 = arith.constant 56 : index
    %c0_63 = arith.constant 0 : index
    %191 = vector.load %arg8[%c56_62, %c0_63] : memref<64x128xf32, #tpu.memory_space<vmem>>, vector<8x128xf32>
    %192 = vector.extract_strided_slice %189 {offsets = [0, 0], sizes = [8, 128], strides = [1, 1]} : vector<64x128xf32> to vector<8x128xf32>
    %193 = arith.addf %191, %192 : vector<8x128xf32>
    %c56_64 = arith.constant 56 : index
    %c0_65 = arith.constant 0 : index
    %194 = vector.load %arg8[%c56_64, %c0_65] : memref<64x128xf32, #tpu.memory_space<vmem>>, vector<8x128xf32>
    tpu.vector_store %arg8[%c56_64, %c0_65], %193 {strides = array<i32>} : memref<64x128xf32, #tpu.memory_space<vmem>>, vector<8x128xf32>,
    %c48_66 = arith.constant 48 : index
    %c0_67 = arith.constant 0 : index
    %195 = vector.load %arg8[%c48_66, %c0_67] : memref<64x128xf32, #tpu.memory_space<vmem>>, vector<8x128xf32>
    %196 = vector.extract_strided_slice %189 {offsets = [8, 0], sizes = [8, 128], strides = [1, 1]} : vector<64x128xf32> to vector<8x128xf32>
    %197 = arith.addf %195, %196 : vector<8x128xf32>
    %c48_68 = arith.constant 48 : index
    %c0_69 = arith.constant 0 : index
    %198 = vector.load %arg8[%c48_68, %c0_69] : memref<64x128xf32, #tpu.memory_space<vmem>>, vector<8x128xf32>
    tpu.vector_store %arg8[%c48_68, %c0_69], %197 {strides = array<i32>} : memref<64x128xf32, #tpu.memory_space<vmem>>, vector<8x128xf32>,
    %c40_70 = arith.constant 40 : index
    %c0_71 = arith.constant 0 : index
    %199 = vector.load %arg8[%c40_70, %c0_71] : memref<64x128xf32, #tpu.memory_space<vmem>>, vector<8x128xf32>
    %200 = vector.extract_strided_slice %189 {offsets = [16, 0], sizes = [8, 128], strides = [1, 1]} : vector<64x128xf32> to vector<8x128xf32>
    %201 = arith.addf %199, %200 : vector<8x128xf32>
    %c40_72 = arith.constant 40 : index
    %c0_73 = arith.constant 0 : index
    %202 = vector.load %arg8[%c40_72, %c0_73] : memref<64x128xf32, #tpu.memory_space<vmem>>, vector<8x128xf32>
    tpu.vector_store %arg8[%c40_72, %c0_73], %201 {strides = array<i32>} : memref<64x128xf32, #tpu.memory_space<vmem>>, vector<8x128xf32>,
    %c32_74 = arith.constant 32 : index
    %c0_75 = arith.constant 0 : index
    %203 = vector.load %arg8[%c32_74, %c0_75] : memref<64x128xf32, #tpu.memory_space<vmem>>, vector<8x128xf32>
    %204 = vector.extract_strided_slice %189 {offsets = [24, 0], sizes = [8, 128], strides = [1, 1]} : vector<64x128xf32> to vector<8x128xf32>
    %205 = arith.addf %203, %204 : vector<8x128xf32>
    %c32_76 = arith.constant 32 : index
    %c0_77 = arith.constant 0 : index
    %206 = vector.load %arg8[%c32_76, %c0_77] : memref<64x128xf32, #tpu.memory_space<vmem>>, vector<8x128xf32>
    tpu.vector_store %arg8[%c32_76, %c0_77], %205 {strides = array<i32>} : memref<64x128xf32, #tpu.memory_space<vmem>>, vector<8x128xf32>,
    %c24_78 = arith.constant 24 : index
    %c0_79 = arith.constant 0 : index
    %207 = vector.load %arg8[%c24_78, %c0_79] : memref<64x128xf32, #tpu.memory_space<vmem>>, vector<8x128xf32>
    %208 = vector.extract_strided_slice %189 {offsets = [32, 0], sizes = [8, 128], strides = [1, 1]} : vector<64x128xf32> to vector<8x128xf32>
    %209 = arith.addf %207, %208 : vector<8x128xf32>
    %c24_80 = arith.constant 24 : index
    %c0_81 = arith.constant 0 : index
    %210 = vector.load %arg8[%c24_80, %c0_81] : memref<64x128xf32, #tpu.memory_space<vmem>>, vector<8x128xf32>
    tpu.vector_store %arg8[%c24_80, %c0_81], %209 {strides = array<i32>} : memref<64x128xf32, #tpu.memory_space<vmem>>, vector<8x128xf32>,
    %c16_82 = arith.constant 16 : index
    %c0_83 = arith.constant 0 : index
    %211 = vector.load %arg8[%c16_82, %c0_83] : memref<64x128xf32, #tpu.memory_space<vmem>>, vector<8x128xf32>
    %212 = vector.extract_strided_slice %189 {offsets = [40, 0], sizes = [8, 128], strides = [1, 1]} : vector<64x128xf32> to vector<8x128xf32>
    %213 = arith.addf %211, %212 : vector<8x128xf32>
    %c16_84 = arith.constant 16 : index
    %c0_85 = arith.constant 0 : index
    %214 = vector.load %arg8[%c16_84, %c0_85] : memref<64x128xf32, #tpu.memory_space<vmem>>, vector<8x128xf32>
    tpu.vector_store %arg8[%c16_84, %c0_85], %213 {strides = array<i32>} : memref<64x128xf32, #tpu.memory_space<vmem>>, vector<8x128xf32>,
    %c8_86 = arith.constant 8 : index
    %c0_87 = arith.constant 0 : index
    %215 = vector.load %arg8[%c8_86, %c0_87] : memref<64x128xf32, #tpu.memory_space<vmem>>, vector<8x128xf32>
    %216 = vector.extract_strided_slice %189 {offsets = [48, 0], sizes = [8, 128], strides = [1, 1]} : vector<64x128xf32> to vector<8x128xf32>
    %217 = arith.addf %215, %216 : vector<8x128xf32>
    %c8_88 = arith.constant 8 : index
    %c0_89 = arith.constant 0 : index
    %218 = vector.load %arg8[%c8_88, %c0_89] : memref<64x128xf32, #tpu.memory_space<vmem>>, vector<8x128xf32>
    tpu.vector_store %arg8[%c8_88, %c0_89], %217 {strides = array<i32>} : memref<64x128xf32, #tpu.memory_space<vmem>>, vector<8x128xf32>,
    %c0_90 = arith.constant 0 : index
    %c0_91 = arith.constant 0 : index
    %219 = vector.load %arg8[%c0_90, %c0_91] : memref<64x128xf32, #tpu.memory_space<vmem>>, vector<8x128xf32>
    %220 = vector.extract_strided_slice %189 {offsets = [56, 0], sizes = [8, 128], strides = [1, 1]} : vector<64x128xf32> to vector<8x128xf32>
    %221 = arith.addf %219, %220 : vector<8x128xf32>
    %c0_92 = arith.constant 0 : index
    %c0_93 = arith.constant 0 : index
    %222 = vector.load %arg8[%c0_92, %c0_93] : memref<64x128xf32, #tpu.memory_space<vmem>>, vector<8x128xf32>
    tpu.vector_store %arg8[%c0_92, %c0_93], %221 {strides = array<i32>} : memref<64x128xf32, #tpu.memory_space<vmem>>, vector<8x128xf32>,
    return
  }
}

</mosaic_0001>

<llo_original>
// kernel: bilstm_forward.1
$region0: #{bilstm_forward.1}
  #allocation0 [shape = 'u32[]', space=smem, size = 0x4, offset = 0x4, fixed_abs, tag = 'smem constant byte address 0x4 - core index']
  #allocation1 [shape = 'u32[144,128]{1,0:T(1,128)}', space=vmem, size = 0x12000, scoped, tag = 'internal scratch']
  #allocation2 [shape = 'f32[64,32]{1,0:T(8,128)}', space=vmem, size = 0x8000, scoped, tag = 'scratch operand']
  %s0 = inlined_call_operand.vmem [shape: f32[64,72], index: 0, kind: input, shape index: {}]
  %s1 = inlined_call_operand.vmem [shape: f32[72,128], index: 1, kind: input, shape index: {}]
  %s2 = inlined_call_operand.vmem [shape: f32[32,128], index: 2, kind: input, shape index: {}]
  %s3 = inlined_call_operand.vmem [shape: f32[8,32], index: 3, kind: input, shape index: {}]
  %s4 = inlined_call_operand.vmem [shape: f32[8,32], index: 4, kind: input, shape index: {}]
  %s5 = inlined_call_operand.vmem [shape: f32[32,128], index: 5, kind: input, shape index: {}]
  %s6 = inlined_call_operand.vmem [shape: f32[32,128], index: 6, kind: input, shape index: {}]
  %s7 = inlined_call_operand.vmem [shape: f32[1,128], index: 7, kind: input, shape index: {}]
  %s8 = inlined_call_operand.vmem [shape: f32[64,128], index: 8, kind: output, shape index: {}]
  %s9 = sld [smem:[#allocation0]]
  $region42: #{bilstm_forward.1} parent=0
    _
  %s11 = ssub.s32 1, %s9
  %s12 = scalar_select 0, %s11, %s9
  // Predicated region
  $region2: #{bilstm_forward.1} parent=0 // pred_check
    _
  $region3: #{bilstm_forward.1} parent=0 // pred_check_branch
    %14 = sbr.rel (0) target = $region5
  $region4: #{bilstm_forward.1} parent=0 // pred_region
    _
  $region5: #{bilstm_forward.1} parent=0 // pred_fallthru
    _
  // Predicated region
  $region6: #{bilstm_forward.1} parent=0 // pred_check
    _
  $region7: #{bilstm_forward.1} parent=0 // pred_check_branch
    %16 = sbr.rel (0) target = $region9
  $region8: #{bilstm_forward.1} parent=0 // pred_region
    _
  $region9: #{bilstm_forward.1} parent=0 // pred_fallthru
    _
  // Predicated region
  $region10: #{bilstm_forward.1} parent=0 // pred_check
    _
  $region11: #{bilstm_forward.1} parent=0 // pred_check_branch
    %18 = sbr.rel (0) target = $region13
  $region12: #{bilstm_forward.1} parent=0 // pred_region
    _
  $region13: #{bilstm_forward.1} parent=0 // pred_fallthru
    _
  // Predicated region
  $region14: #{bilstm_forward.1} parent=0 // pred_check
    _
  $region15: #{bilstm_forward.1} parent=0 // pred_check_branch
    %20 = sbr.rel (0) target = $region17
  $region16: #{bilstm_forward.1} parent=0 // pred_region
    _
  $region17: #{bilstm_forward.1} parent=0 // pred_fallthru
    _
  // Predicated region
  $region18: #{bilstm_forward.1} parent=0 // pred_check
    _
  $region19: #{bilstm_forward.1} parent=0 // pred_check_branch
    %22 = sbr.rel (0) target = $region21
  $region20: #{bilstm_forward.1} parent=0 // pred_region
    _
  $region21: #{bilstm_forward.1} parent=0 // pred_fallthru
    _
  // Predicated region
  $region22: #{bilstm_forward.1} parent=0 // pred_check
    _
  $region23: #{bilstm_forward.1} parent=0 // pred_check_branch
    %24 = sbr.rel (0) target = $region25
  $region24: #{bilstm_forward.1} parent=0 // pred_region
    _
  $region25: #{bilstm_forward.1} parent=0 // pred_fallthru
    _
  // Predicated region
  $region26: #{bilstm_forward.1} parent=0 // pred_check
    _
  $region27: #{bilstm_forward.1} parent=0 // pred_check_branch
    %26 = sbr.rel (0) target = $region29
  $region28: #{bilstm_forward.1} parent=0 // pred_region
    _
  $region29: #{bilstm_forward.1} parent=0 // pred_fallthru
    _
  // Predicated region
  $region30: #{bilstm_forward.1} parent=0 // pred_check
    _
  $region31: #{bilstm_forward.1} parent=0 // pred_check_branch
    %28 = sbr.rel (0) target = $region33
  $region32: #{bilstm_forward.1} parent=0 // pred_region
    _
  $region33: #{bilstm_forward.1} parent=0 // pred_fallthru
    _
  %v29 = vld [vmem:[%s0] sm:$0xff]
  %v30 = vld [vmem:[%s0 + $0x8] sm:$0xff]
  %v31 = vld [vmem:[%s0 + $0x10] sm:$0xff]
  %v32 = vld [vmem:[%s0 + $0x18] sm:$0xff]
  %v33 = vld [vmem:[%s0 + $0x20] sm:$0xff]
  %v34 = vld [vmem:[%s0 + $0x28] sm:$0xff]
  %v35 = vld [vmem:[%s0 + $0x30] sm:$0xff]
  %v36 = vld [vmem:[%s0 + $0x38] sm:$0xff]
  %v37 = vld [vmem:[%s1] sm:$0xff]
  %v38 = vld [vmem:[%s1 + $0x8] sm:$0xff]
  %v39 = vld [vmem:[%s1 + $0x10] sm:$0xff]
  %v40 = vld [vmem:[%s1 + $0x18] sm:$0xff]
  %v41 = vld [vmem:[%s1 + $0x20] sm:$0xff]
  %v42 = vld [vmem:[%s1 + $0x28] sm:$0xff]
  %v43 = vld [vmem:[%s1 + $0x30] sm:$0xff]
  %v44 = vld [vmem:[%s1 + $0x38] sm:$0xff]
  %v45 = vld [vmem:[%s1 + $0x40] sm:$0xff]
  %vm46 = vcmask 588800
  %v48 = vsel %vm46, %v29, 0
  %v51 = vsel %vm46, %v30, 0
  %v54 = vsel %vm46, %v31, 0
  %v57 = vsel %vm46, %v32, 0
  %v60 = vsel %vm46, %v33, 0
  %v63 = vsel %vm46, %v34, 0
  %v66 = vsel %vm46, %v35, 0
  %v69 = vsel %vm46, %v36, 0
  %71 = vmatprep.subr.mxu0 0.0
  %72 = vmatpush1.msra.mxu0 %v37
  %73 = vmatprep.subr.mxu0 0.0
  %74 = vmatpush1.msra.mxu0 %v38
  %75 = vmatprep.subr.mxu0 0.0
  %76 = vmatpush1.msra.mxu0 %v39
  %77 = vmatprep.subr.mxu0 0.0
  %78 = vmatpush1.msra.mxu0 %v40
  %79 = vmatprep.subr.mxu0 0.0
  %80 = vmatpush1.msra.mxu0 %v41
  %81 = vmatprep.subr.mxu0 0.0
  %82 = vmatpush1.msra.mxu0 %v42
  %83 = vmatprep.subr.mxu0 0.0
  %84 = vmatpush1.msra.mxu0 %v43
  %85 = vmatprep.subr.mxu0 0.0
  %86 = vmatpush1.msra.mxu0 %v44
  %87 = vmatprep.subr.mxu0 0.0
  %88 = vmatpush1.msra.mxu0 %v45
  %89 = vmatprep.subr.mxu0 0.0
  %90 = vmatpush1.msra.mxu0 0.0
  %91 = vmatprep.subr.mxu0 0.0
  %92 = vmatpush1.msra.mxu0 0.0
  %93 = vmatprep.subr.mxu0 0.0
  %94 = vmatpush1.msra.mxu0 0.0
  %95 = vmatprep.subr.mxu0 0.0
  %96 = vmatpush1.msra.mxu0 0.0
  %97 = vmatprep.subr.mxu0 0.0
  %98 = vmatpush1.msra.mxu0 0.0
  %99 = vmatprep.subr.mxu0 0.0
  %100 = vmatpush1.msra.mxu0 0.0
  %101 = vmatprep.subr.mxu0 0.0
  %102 = vmatpush1.msra.mxu0 0.0
  %103 = vmatprep.subr.mxu0 0.0
  %104 = vmatpush1.msra.mxu0 0.0
  %105 = vmatprep.subr.mxu0 0.0
  %106 = vmatpush1.msra.mxu0 0.0
  %107 = vmatprep.subr.mxu0 0.0
  %108 = vmatpush1.msra.mxu0 0.0
  %109 = vmatprep.subr.mxu0 0.0
  %110 = vmatpush1.msra.mxu0 0.0
  %111 = vmatprep.subr.mxu0 0.0
  %112 = vmatpush1.msra.mxu0 0.0
  %113 = vmatprep.subr.mxu0 0.0
  %114 = vmatpush1.msra.mxu0 0.0
  %115 = vmatprep.subr.mxu0 0.0
  %116 = vmatpush1.msra.mxu0 0.0
  %117 = vmatprep.subr.mxu0 0.0
  %118 = vmatpush1.msra.mxu0 0.0
  %119 = vmatprep.subr.mxu0 0.0
  %120 = vmatpush1.msra.mxu0 0.0
  %121 = vmatprep.subr.mxu0 0.0
  %122 = vmatpush1.msra.mxu0 0.0
  %123 = vmatprep.subr.mxu0 0.0
  %124 = vmatpush1.msra.mxu0 0.0
  %125 = vmatprep.subr.mxu0 0.0
  %126 = vmatpush1.msra.mxu0 0.0
  %127 = vmatprep.subr.mxu0 0.0
  %128 = vmatpush1.msra.mxu0 0.0
  %129 = vmatprep.subr.mxu0 0.0
  %130 = vmatpush1.msra.mxu0 0.0
  %131 = vmatprep.subr.mxu0 0.0
  %132 = vmatpush1.msra.mxu0 0.0
  %133 = vmatprep.subr.mxu0 0.0
  %134 = vmatpush1.msra.mxu0 0.0
  %135 = vmatprep.mubr.f32.mxu0 0.0
  %136 = vmatmul.mubr.f32.gmra.mrb[0].mxu0 %v48
  %v137 = vpop.f32.mrb[0].mxu0
  %v138 = vadd.f32 0.0, %v137
  %v139 = vpop.f32.mrb[0].mxu0
  %140 = vmatprep.mubr.f32.mxu0 0.0
  %141 = vmatmul.mubr.f32.gmra.mrb[0].mxu0 %v51
  %v142 = vpop.f32.mrb[0].mxu0
  %v143 = vadd.f32 0.0, %v142
  %v144 = vpop.f32.mrb[0].mxu0
  %145 = vmatprep.mubr.f32.mxu0 0.0
  %146 = vmatmul.mubr.f32.gmra.mrb[0].mxu0 %v54
  %v147 = vpop.f32.mrb[0].mxu0
  %v148 = vadd.f32 0.0, %v147
  %v149 = vpop.f32.mrb[0].mxu0
  %150 = vmatprep.mubr.f32.mxu0 0.0
  %151 = vmatmul.mubr.f32.gmra.mrb[0].mxu0 %v57
  %v152 = vpop.f32.mrb[0].mxu0
  %v153 = vadd.f32 0.0, %v152
  %v154 = vpop.f32.mrb[0].mxu0
  %155 = vmatprep.mubr.f32.mxu0 0.0
  %156 = vmatmul.mubr.f32.gmra.mrb[0].mxu0 %v60
  %v157 = vpop.f32.mrb[0].mxu0
  %v158 = vadd.f32 0.0, %v157
  %v159 = vpop.f32.mrb[0].mxu0
  %160 = vmatprep.mubr.f32.mxu0 0.0
  %161 = vmatmul.mubr.f32.gmra.mrb[0].mxu0 %v63
  %v162 = vpop.f32.mrb[0].mxu0
  %v163 = vadd.f32 0.0, %v162
  %v164 = vpop.f32.mrb[0].mxu0
  %165 = vmatprep.mubr.f32.mxu0 0.0
  %166 = vmatmul.mubr.f32.gmra.mrb[0].mxu0 %v66
  %v167 = vpop.f32.mrb[0].mxu0
  %v168 = vadd.f32 0.0, %v167
  %v169 = vpop.f32.mrb[0].mxu0
  %170 = vmatprep.mubr.f32.mxu0 0.0
  %171 = vmatmul.mubr.f32.gmra.mrb[0].mxu0 %v69
  %v172 = vpop.f32.mrb[0].mxu0
  %v173 = vadd.f32 0.0, %v172
  %v174 = vpop.f32.mrb[0].mxu0
  %175 = vdwg.mxu0
  %v176 = vld [vmem:[%s2] sm:$0xff]
  %v177 = vld [vmem:[%s2 + $0x8] sm:$0xff]
  %v178 = vld [vmem:[%s2 + $0x10] sm:$0xff]
  %v179 = vld [vmem:[%s2 + $0x18] sm:$0xff]
  %v180 = vld [vmem:[%s3] sm:$0xff]
  %v181 = vld [vmem:[%s4] sm:$0xff]
  %vm182 = vcmask 261120
  %v184 = vsel %vm182, %v180, 0
  %186 = vmatprep.subr.mxu0 0.0
  %187 = vmatpush1.msra.mxu0 %v176
  %188 = vmatprep.subr.mxu0 0.0
  %189 = vmatpush1.msra.mxu0 %v177
  %190 = vmatprep.subr.mxu0 0.0
  %191 = vmatpush1.msra.mxu0 %v178
  %192 = vmatprep.subr.mxu0 0.0
  %193 = vmatpush1.msra.mxu0 %v179
  %194 = vmatprep.subr.mxu0 0.0
  %195 = vmatpush1.msra.mxu0 0.0
  %196 = vmatprep.subr.mxu0 0.0
  %197 = vmatpush1.msra.mxu0 0.0
  %198 = vmatprep.subr.mxu0 0.0
  %199 = vmatpush1.msra.mxu0 0.0
  %200 = vmatprep.subr.mxu0 0.0
  %201 = vmatpush1.msra.mxu0 0.0
  %202 = vmatprep.subr.mxu0 0.0
  %203 = vmatpush1.msra.mxu0 0.0
  %204 = vmatprep.subr.mxu0 0.0
  %205 = vmatpush1.msra.mxu0 0.0
  %206 = vmatprep.subr.mxu0 0.0
  %207 = vmatpush1.msra.mxu0 0.0
  %208 = vmatprep.subr.mxu0 0.0
  %209 = vmatpush1.msra.mxu0 0.0
  %210 = vmatprep.subr.mxu0 0.0
  %211 = vmatpush1.msra.mxu0 0.0
  %212 = vmatprep.subr.mxu0 0.0
  %213 = vmatpush1.msra.mxu0 0.0
  %214 = vmatprep.subr.mxu0 0.0
  %215 = vmatpush1.msra.mxu0 0.0
  %216 = vmatprep.subr.mxu0 0.0
  %217 = vmatpush1.msra.mxu0 0.0
  %218 = vmatprep.subr.mxu0 0.0
  %219 = vmatpush1.msra.mxu0 0.0
  %220 = vmatprep.subr.mxu0 0.0
  %221 = vmatpush1.msra.mxu0 0.0
  %222 = vmatprep.subr.mxu0 0.0
  %223 = vmatpush1.msra.mxu0 0.0
  %224 = vmatprep.subr.mxu0 0.0
  %225 = vmatpush1.msra.mxu0 0.0
  %226 = vmatprep.subr.mxu0 0.0
  %227 = vmatpush1.msra.mxu0 0.0
  %228 = vmatprep.subr.mxu0 0.0
  %229 = vmatpush1.msra.mxu0 0.0
  %230 = vmatprep.subr.mxu0 0.0
  %231 = vmatpush1.msra.mxu0 0.0
  %232 = vmatprep.subr.mxu0 0.0
  %233 = vmatpush1.msra.mxu0 0.0
  %234 = vmatprep.subr.mxu0 0.0
  %235 = vmatpush1.msra.mxu0 0.0
  %236 = vmatprep.subr.mxu0 0.0
  %237 = vmatpush1.msra.mxu0 0.0
  %238 = vmatprep.subr.mxu0 0.0
  %239 = vmatpush1.msra.mxu0 0.0
  %240 = vmatprep.subr.mxu0 0.0
  %241 = vmatpush1.msra.mxu0 0.0
  %242 = vmatprep.subr.mxu0 0.0
  %243 = vmatpush1.msra.mxu0 0.0
  %244 = vmatprep.subr.mxu0 0.0
  %245 = vmatpush1.msra.mxu0 0.0
  %246 = vmatprep.subr.mxu0 0.0
  %247 = vmatpush1.msra.mxu0 0.0
  %248 = vmatprep.subr.mxu0 0.0
  %249 = vmatpush1.msra.mxu0 0.0
  %250 = vmatprep.mubr.f32.mxu0 0.0
  %251 = vmatmul.mubr.f32.gmra.mrb[0].mxu0 %v184
  %v252 = vpop.f32.mrb[0].mxu0
  %v253 = vadd.f32 0.0, %v252
  %v254 = vpop.f32.mrb[0].mxu0
  %255 = vdwg.mxu0
  %v256 = vadd.f32 %v138, %v253
  %v257 = vxor.u32 %v256, 2147483648
  %v258 = vmul.f32 %v257, 1.442695
  %v259 = vpow.pop %v258
  %v260 = vadd.f32 %v259, 1.0
  %v261 = vrcp.pop %v260
  %v262 = vmul.f32 1.0, %v261
  %v263 = vmul.f32 %v262, 2.0
  %v264 = vsub.f32 %v263, 1.0
  %266 = vrot.lane.b32.xlu0 %v181, 32
  %v267 = vpop.permute.xlu0 %266
  %v269 = vmul.f32 %v262, %v267
  %271 = vrot.lane.b32.xlu0 %v264, 32
  %v272 = vpop.permute.xlu0 %271
  %v274 = vmul.f32 %v262, %v272
  %276 = vrot.lane.b32.xlu0 %v274, 32
  %v277 = vpop.permute.xlu0 %276
  %v279 = vadd.f32 %v269, %v277
  %v280 = vtanh.pop %v279
  %282 = vrot.lane.b32.xlu0 %v280, 32
  %v283 = vpop.permute.xlu0 %282
  %v285 = vmul.f32 %v262, %v283
  %287 = vrot.lane.b32.xlu0 %v285, 64
  %v288 = vpop.permute.xlu0 %287
  %290 = vst.msk [vmem:[#allocation2] sm:$0xff] %vm182, %v288
  %v291 = vsel %vm182, %v288, 0
  %293 = vmatprep.subr.mxu0 0.0
  %294 = vmatpush1.msra.mxu0 %v176
  %295 = vmatprep.subr.mxu0 0.0
  %296 = vmatpush1.msra.mxu0 %v177
  %297 = vmatprep.subr.mxu0 0.0
  %298 = vmatpush1.msra.mxu0 %v178
  %299 = vmatprep.subr.mxu0 0.0
  %300 = vmatpush1.msra.mxu0 %v179
  %301 = vmatprep.subr.mxu0 0.0
  %302 = vmatpush1.msra.mxu0 0.0
  %303 = vmatprep.subr.mxu0 0.0
  %304 = vmatpush1.msra.mxu0 0.0
  %305 = vmatprep.subr.mxu0 0.0
  %306 = vmatpush1.msra.mxu0 0.0
  %307 = vmatprep.subr.mxu0 0.0
  %308 = vmatpush1.msra.mxu0 0.0
  %309 = vmatprep.subr.mxu0 0.0
  %310 = vmatpush1.msra.mxu0 0.0
  %311 = vmatprep.subr.mxu0 0.0
  %312 = vmatpush1.msra.mxu0 0.0
  %313 = vmatprep.subr.mxu0 0.0
  %314 = vmatpush1.msra.mxu0 0.0
  %315 = vmatprep.subr.mxu0 0.0
  %316 = vmatpush1.msra.mxu0 0.0
  %317 = vmatprep.subr.mxu0 0.0
  %318 = vmatpush1.msra.mxu0 0.0
  %319 = vmatprep.subr.mxu0 0.0
  %320 = vmatpush1.msra.mxu0 0.0
  %321 = vmatprep.subr.mxu0 0.0
  %322 = vmatpush1.msra.mxu0 0.0
  %323 = vmatprep.subr.mxu0 0.0
  %324 = vmatpush1.msra.mxu0 0.0
  %325 = vmatprep.subr.mxu0 0.0
  %326 = vmatpush1.msra.mxu0 0.0
  %327 = vmatprep.subr.mxu0 0.0
  %328 = vmatpush1.msra.mxu0 0.0
  %329 = vmatprep.subr.mxu0 0.0
  %330 = vmatpush1.msra.mxu0 0.0
  %331 = vmatprep.subr.mxu0 0.0
  %332 = vmatpush1.msra.mxu0 0.0
  %333 = vmatprep.subr.mxu0 0.0
  %334 = vmatpush1.msra.mxu0 0.0
  %335 = vmatprep.subr.mxu0 0.0
  %336 = vmatpush1.msra.mxu0 0.0
  %337 = vmatprep.subr.mxu0 0.0
  %338 = vmatpush1.msra.mxu0 0.0
  %339 = vmatprep.subr.mxu0 0.0
  %340 = vmatpush1.msra.mxu0 0.0
  %341 = vmatprep.subr.mxu0 0.0
  %342 = vmatpush1.msra.mxu0 0.0
  %343 = vmatprep.subr.mxu0 0.0
  %344 = vmatpush1.msra.mxu0 0.0
  %345 = vmatprep.subr.mxu0 0.0
  %346 = vmatpush1.msra.mxu0 0.0
  %347 = vmatprep.subr.mxu0 0.0
  %348 = vmatpush1.msra.mxu0 0.0
  %349 = vmatprep.subr.mxu0 0.0
  %350 = vmatpush1.msra.mxu0 0.0
  %351 = vmatprep.subr.mxu0 0.0
  %352 = vmatpush1.msra.mxu0 0.0
  %353 = vmatprep.subr.mxu0 0.0
  %354 = vmatpush1.msra.mxu0 0.0
  %355 = vmatprep.subr.mxu0 0.0
  %356 = vmatpush1.msra.mxu0 0.0
  %357 = vmatprep.mubr.f32.mxu0 0.0
  %358 = vmatmul.mubr.f32.gmra.mrb[0].mxu0 %v291
  %v359 = vpop.f32.mrb[0].mxu0
  %v360 = vadd.f32 0.0, %v359
  %v361 = vpop.f32.mrb[0].mxu0
  %362 = vdwg.mxu0
  %v363 = vadd.f32 %v143, %v360
  %v364 = vxor.u32 %v363, 2147483648
  %v365 = vmul.f32 %v364, 1.442695
  %v366 = vpow.pop %v365
  %v367 = vadd.f32 %v366, 1.0
  %v368 = vrcp.pop %v367
  %v369 = vmul.f32 1.0, %v368
  %v370 = vmul.f32 %v369, 2.0
  %v371 = vsub.f32 %v370, 1.0
  %v372 = vmul.f32 %v369, %v279
  %374 = vrot.lane.b32.xlu0 %v371, 32
  %v375 = vpop.permute.xlu0 %374
  %v377 = vmul.f32 %v369, %v375
  %379 = vrot.lane.b32.xlu0 %v377, 32
  %v380 = vpop.permute.xlu0 %379
  %v382 = vadd.f32 %v372, %v380
  %v383 = vtanh.pop %v382
  %385 = vrot.lane.b32.xlu0 %v383, 32
  %v386 = vpop.permute.xlu0 %385
  %v388 = vmul.f32 %v369, %v386
  %390 = vrot.lane.b32.xlu0 %v388, 64
  %v391 = vpop.permute.xlu0 %390
  %393 = vst.msk [vmem:[#allocation2 + $0x8] sm:$0xff] %vm182, %v391
  %v394 = vsel %vm182, %v391, 0
  %396 = vmatprep.subr.mxu0 0.0
  %397 = vmatpush1.msra.mxu0 %v176
  %398 = vmatprep.subr.mxu0 0.0
  %399 = vmatpush1.msra.mxu0 %v177
  %400 = vmatprep.subr.mxu0 0.0
  %401 = vmatpush1.msra.mxu0 %v178
  %402 = vmatprep.subr.mxu0 0.0
  %403 = vmatpush1.msra.mxu0 %v179
  %404 = vmatprep.subr.mxu0 0.0
  %405 = vmatpush1.msra.mxu0 0.0
  %406 = vmatprep.subr.mxu0 0.0
  %407 = vmatpush1.msra.mxu0 0.0
  %408 = vmatprep.subr.mxu0 0.0
  %409 = vmatpush1.msra.mxu0 0.0
  %410 = vmatprep.subr.mxu0 0.0
  %411 = vmatpush1.msra.mxu0 0.0
  %412 = vmatprep.subr.mxu0 0.0
  %413 = vmatpush1.msra.mxu0 0.0
  %414 = vmatprep.subr.mxu0 0.0
  %415 = vmatpush1.msra.mxu0 0.0
  %416 = vmatprep.subr.mxu0 0.0
  %417 = vmatpush1.msra.mxu0 0.0
  %418 = vmatprep.subr.mxu0 0.0
  %419 = vmatpush1.msra.mxu0 0.0
  %420 = vmatprep.subr.mxu0 0.0
  %421 = vmatpush1.msra.mxu0 0.0
  %422 = vmatprep.subr.mxu0 0.0
  %423 = vmatpush1.msra.mxu0 0.0
  %424 = vmatprep.subr.mxu0 0.0
  %425 = vmatpush1.msra.mxu0 0.0
  %426 = vmatprep.subr.mxu0 0.0
  %427 = vmatpush1.msra.mxu0 0.0
  %428 = vmatprep.subr.mxu0 0.0
  %429 = vmatpush1.msra.mxu0 0.0
  %430 = vmatprep.subr.mxu0 0.0
  %431 = vmatpush1.msra.mxu0 0.0
  %432 = vmatprep.subr.mxu0 0.0
  %433 = vmatpush1.msra.mxu0 0.0
  %434 = vmatprep.subr.mxu0 0.0
  %435 = vmatpush1.msra.mxu0 0.0
  %436 = vmatprep.subr.mxu0 0.0
  %437 = vmatpush1.msra.mxu0 0.0
  %438 = vmatprep.subr.mxu0 0.0
  %439 = vmatpush1.msra.mxu0 0.0
  %440 = vmatprep.subr.mxu0 0.0
  %441 = vmatpush1.msra.mxu0 0.0
  %442 = vmatprep.subr.mxu0 0.0
  %443 = vmatpush1.msra.mxu0 0.0
  %444 = vmatprep.subr.mxu0 0.0
  %445 = vmatpush1.msra.mxu0 0.0
  %446 = vmatprep.subr.mxu0 0.0
  %447 = vmatpush1.msra.mxu0 0.0
  %448 = vmatprep.subr.mxu0 0.0
  %449 = vmatpush1.msra.mxu0 0.0
  %450 = vmatprep.subr.mxu0 0.0
  %451 = vmatpush1.msra.mxu0 0.0
  %452 = vmatprep.subr.mxu0 0.0
  %453 = vmatpush1.msra.mxu0 0.0
  %454 = vmatprep.subr.mxu0 0.0
  %455 = vmatpush1.msra.mxu0 0.0
  %456 = vmatprep.subr.mxu0 0.0
  %457 = vmatpush1.msra.mxu0 0.0
  %458 = vmatprep.subr.mxu0 0.0
  %459 = vmatpush1.msra.mxu0 0.0
  %460 = vmatprep.mubr.f32.mxu0 0.0
  %461 = vmatmul.mubr.f32.gmra.mrb[0].mxu0 %v394
  %v462 = vpop.f32.mrb[0].mxu0
  %v463 = vadd.f32 0.0, %v462
  %v464 = vpop.f32.mrb[0].mxu0
  %465 = vdwg.mxu0
  %v466 = vadd.f32 %v148, %v463
  %v467 = vxor.u32 %v466, 2147483648
  %v468 = vmul.f32 %v467, 1.442695
  %v469 = vpow.pop %v468
  %v470 = vadd.f32 %v469, 1.0
  %v471 = vrcp.pop %v470
  %v472 = vmul.f32 1.0, %v471
  %v473 = vmul.f32 %v472, 2.0
  %v474 = vsub.f32 %v473, 1.0
  %v475 = vmul.f32 %v472, %v382
  %477 = vrot.lane.b32.xlu0 %v474, 32
  %v478 = vpop.permute.xlu0 %477
  %v480 = vmul.f32 %v472, %v478
  %482 = vrot.lane.b32.xlu0 %v480, 32
  %v483 = vpop.permute.xlu0 %482
  %v485 = vadd.f32 %v475, %v483
  %v486 = vtanh.pop %v485
  %488 = vrot.lane.b32.xlu0 %v486, 32
  %v489 = vpop.permute.xlu0 %488
  %v491 = vmul.f32 %v472, %v489
  %493 = vrot.lane.b32.xlu0 %v491, 64
  %v494 = vpop.permute.xlu0 %493
  %496 = vst.msk [vmem:[#allocation2 + $0x10] sm:$0xff] %vm182, %v494
  %v497 = vsel %vm182, %v494, 0
  %499 = vmatprep.subr.mxu0 0.0
  %500 = vmatpush1.msra.mxu0 %v176
  %501 = vmatprep.subr.mxu0 0.0
  %502 = vmatpush1.msra.mxu0 %v177
  %503 = vmatprep.subr.mxu0 0.0
  %504 = vmatpush1.msra.mxu0 %v178
  %505 = vmatprep.subr.mxu0 0.0
  %506 = vmatpush1.msra.mxu0 %v179
  %507 = vmatprep.subr.mxu0 0.0
  %508 = vmatpush1.msra.mxu0 0.0
  %509 = vmatprep.subr.mxu0 0.0
  %510 = vmatpush1.msra.mxu0 0.0
  %511 = vmatprep.subr.mxu0 0.0
  %512 = vmatpush1.msra.mxu0 0.0
  %513 = vmatprep.subr.mxu0 0.0
  %514 = vmatpush1.msra.mxu0 0.0
  %515 = vmatprep.subr.mxu0 0.0
  %516 = vmatpush1.msra.mxu0 0.0
  %517 = vmatprep.subr.mxu0 0.0
  %518 = vmatpush1.msra.mxu0 0.0
  %519 = vmatprep.subr.mxu0 0.0
  %520 = vmatpush1.msra.mxu0 0.0
  %521 = vmatprep.subr.mxu0 0.0
  %522 = vmatpush1.msra.mxu0 0.0
  %523 = vmatprep.subr.mxu0 0.0
  %524 = vmatpush1.msra.mxu0 0.0
  %525 = vmatprep.subr.mxu0 0.0
  %526 = vmatpush1.msra.mxu0 0.0
  %527 = vmatprep.subr.mxu0 0.0
  %528 = vmatpush1.msra.mxu0 0.0
  %529 = vmatprep.subr.mxu0 0.0
  %530 = vmatpush1.msra.mxu0 0.0
  %531 = vmatprep.subr.mxu0 0.0
  %532 = vmatpush1.msra.mxu0 0.0
  %533 = vmatprep.subr.mxu0 0.0
  %534 = vmatpush1.msra.mxu0 0.0
  %535 = vmatprep.subr.mxu0 0.0
  %536 = vmatpush1.msra.mxu0 0.0
  %537 = vmatprep.subr.mxu0 0.0
  %538 = vmatpush1.msra.mxu0 0.0
  %539 = vmatprep.subr.mxu0 0.0
  %540 = vmatpush1.msra.mxu0 0.0
  %541 = vmatprep.subr.mxu0 0.0
  %542 = vmatpush1.msra.mxu0 0.0
  %543 = vmatprep.subr.mxu0 0.0
  %544 = vmatpush1.msra.mxu0 0.0
  %545 = vmatprep.subr.mxu0 0.0
  %546 = vmatpush1.msra.mxu0 0.0
  %547 = vmatprep.subr.mxu0 0.0
  %548 = vmatpush1.msra.mxu0 0.0
  %549 = vmatprep.subr.mxu0 0.0
  %550 = vmatpush1.msra.mxu0 0.0
  %551 = vmatprep.subr.mxu0 0.0
  %552 = vmatpush1.msra.mxu0 0.0
  %553 = vmatprep.subr.mxu0 0.0
  %554 = vmatpush1.msra.mxu0 0.0
  %555 = vmatprep.subr.mxu0 0.0
  %556 = vmatpush1.msra.mxu0 0.0
  %557 = vmatprep.subr.mxu0 0.0
  %558 = vmatpush1.msra.mxu0 0.0
  %559 = vmatprep.subr.mxu0 0.0
  %560 = vmatpush1.msra.mxu0 0.0
  %561 = vmatprep.subr.mxu0 0.0
  %562 = vmatpush1.msra.mxu0 0.0
  %563 = vmatprep.mubr.f32.mxu0 0.0
  %564 = vmatmul.mubr.f32.gmra.mrb[0].mxu0 %v497
  %v565 = vpop.f32.mrb[0].mxu0
  %v566 = vadd.f32 0.0, %v565
  %v567 = vpop.f32.mrb[0].mxu0
  %568 = vdwg.mxu0
  %v569 = vadd.f32 %v153, %v566
  %v570 = vxor.u32 %v569, 2147483648
  %v571 = vmul.f32 %v570, 1.442695
  %v572 = vpow.pop %v571
  %v573 = vadd.f32 %v572, 1.0
  %v574 = vrcp.pop %v573
  %v575 = vmul.f32 1.0, %v574
  %v576 = vmul.f32 %v575, 2.0
  %v577 = vsub.f32 %v576, 1.0
  %v578 = vmul.f32 %v575, %v485
  %580 = vrot.lane.b32.xlu0 %v577, 32
  %v581 = vpop.permute.xlu0 %580
  %v583 = vmul.f32 %v575, %v581
  %585 = vrot.lane.b32.xlu0 %v583, 32
  %v586 = vpop.permute.xlu0 %585
  %v588 = vadd.f32 %v578, %v586
  %v589 = vtanh.pop %v588
  %591 = vrot.lane.b32.xlu0 %v589, 32
  %v592 = vpop.permute.xlu0 %591
  %v594 = vmul.f32 %v575, %v592
  %596 = vrot.lane.b32.xlu0 %v594, 64
  %v597 = vpop.permute.xlu0 %596
  %599 = vst.msk [vmem:[#allocation2 + $0x18] sm:$0xff] %vm182, %v597
  %v600 = vsel %vm182, %v597, 0
  %602 = vmatprep.subr.mxu0 0.0
  %603 = vmatpush1.msra.mxu0 %v176
  %604 = vmatprep.subr.mxu0 0.0
  %605 = vmatpush1.msra.mxu0 %v177
  %606 = vmatprep.subr.mxu0 0.0
  %607 = vmatpush1.msra.mxu0 %v178
  %608 = vmatprep.subr.mxu0 0.0
  %609 = vmatpush1.msra.mxu0 %v179
  %610 = vmatprep.subr.mxu0 0.0
  %611 = vmatpush1.msra.mxu0 0.0
  %612 = vmatprep.subr.mxu0 0.0
  %613 = vmatpush1.msra.mxu0 0.0
  %614 = vmatprep.subr.mxu0 0.0
  %615 = vmatpush1.msra.mxu0 0.0
  %616 = vmatprep.subr.mxu0 0.0
  %617 = vmatpush1.msra.mxu0 0.0
  %618 = vmatprep.subr.mxu0 0.0
  %619 = vmatpush1.msra.mxu0 0.0
  %620 = vmatprep.subr.mxu0 0.0
  %621 = vmatpush1.msra.mxu0 0.0
  %622 = vmatprep.subr.mxu0 0.0
  %623 = vmatpush1.msra.mxu0 0.0
  %624 = vmatprep.subr.mxu0 0.0
  %625 = vmatpush1.msra.mxu0 0.0
  %626 = vmatprep.subr.mxu0 0.0
  %627 = vmatpush1.msra.mxu0 0.0
  %628 = vmatprep.subr.mxu0 0.0
  %629 = vmatpush1.msra.mxu0 0.0
  %630 = vmatprep.subr.mxu0 0.0
  %631 = vmatpush1.msra.mxu0 0.0
  %632 = vmatprep.subr.mxu0 0.0
  %633 = vmatpush1.msra.mxu0 0.0
  %634 = vmatprep.subr.mxu0 0.0
  %635 = vmatpush1.msra.mxu0 0.0
  %636 = vmatprep.subr.mxu0 0.0
  %637 = vmatpush1.msra.mxu0 0.0
  %638 = vmatprep.subr.mxu0 0.0
  %639 = vmatpush1.msra.mxu0 0.0
  %640 = vmatprep.subr.mxu0 0.0
  %641 = vmatpush1.msra.mxu0 0.0
  %642 = vmatprep.subr.mxu0 0.0
  %643 = vmatpush1.msra.mxu0 0.0
  %644 = vmatprep.subr.mxu0 0.0
  %645 = vmatpush1.msra.mxu0 0.0
  %646 = vmatprep.subr.mxu0 0.0
  %647 = vmatpush1.msra.mxu0 0.0
  %648 = vmatprep.subr.mxu0 0.0
  %649 = vmatpush1.msra.mxu0 0.0
  %650 = vmatprep.subr.mxu0 0.0
  %651 = vmatpush1.msra.mxu0 0.0
  %652 = vmatprep.subr.mxu0 0.0
  %653 = vmatpush1.msra.mxu0 0.0
  %654 = vmatprep.subr.mxu0 0.0
  %655 = vmatpush1.msra.mxu0 0.0
  %656 = vmatprep.subr.mxu0 0.0
  %657 = vmatpush1.msra.mxu0 0.0
  %658 = vmatprep.subr.mxu0 0.0
  %659 = vmatpush1.msra.mxu0 0.0
  %660 = vmatprep.subr.mxu0 0.0
  %661 = vmatpush1.msra.mxu0 0.0
  %662 = vmatprep.subr.mxu0 0.0
  %663 = vmatpush1.msra.mxu0 0.0
  %664 = vmatprep.subr.mxu0 0.0
  %665 = vmatpush1.msra.mxu0 0.0
  %666 = vmatprep.mubr.f32.mxu0 0.0
  %667 = vmatmul.mubr.f32.gmra.mrb[0].mxu0 %v600
  %v668 = vpop.f32.mrb[0].mxu0
  %v669 = vadd.f32 0.0, %v668
  %v670 = vpop.f32.mrb[0].mxu0
  %671 = vdwg.mxu0
  %v672 = vadd.f32 %v158, %v669
  %v673 = vxor.u32 %v672, 2147483648
  %v674 = vmul.f32 %v673, 1.442695
  %v675 = vpow.pop %v674
  %v676 = vadd.f32 %v675, 1.0
  %v677 = vrcp.pop %v676
  %v678 = vmul.f32 1.0, %v677
  %v679 = vmul.f32 %v678, 2.0
  %v680 = vsub.f32 %v679, 1.0
  %v681 = vmul.f32 %v678, %v588
  %683 = vrot.lane.b32.xlu0 %v680, 32
  %v684 = vpop.permute.xlu0 %683
  %v686 = vmul.f32 %v678, %v684
  %688 = vrot.lane.b32.xlu0 %v686, 32
  %v689 = vpop.permute.xlu0 %688
  %v691 = vadd.f32 %v681, %v689
  %v692 = vtanh.pop %v691
  %694 = vrot.lane.b32.xlu0 %v692, 32
  %v695 = vpop.permute.xlu0 %694
  %v697 = vmul.f32 %v678, %v695
  %699 = vrot.lane.b32.xlu0 %v697, 64
  %v700 = vpop.permute.xlu0 %699
  %702 = vst.msk [vmem:[#allocation2 + $0x20] sm:$0xff] %vm182, %v700
  %v703 = vsel %vm182, %v700, 0
  %705 = vmatprep.subr.mxu0 0.0
  %706 = vmatpush1.msra.mxu0 %v176
  %707 = vmatprep.subr.mxu0 0.0
  %708 = vmatpush1.msra.mxu0 %v177
  %709 = vmatprep.subr.mxu0 0.0
  %710 = vmatpush1.msra.mxu0 %v178
  %711 = vmatprep.subr.mxu0 0.0
  %712 = vmatpush1.msra.mxu0 %v179
  %713 = vmatprep.subr.mxu0 0.0
  %714 = vmatpush1.msra.mxu0 0.0
  %715 = vmatprep.subr.mxu0 0.0
  %716 = vmatpush1.msra.mxu0 0.0
  %717 = vmatprep.subr.mxu0 0.0
  %718 = vmatpush1.msra.mxu0 0.0
  %719 = vmatprep.subr.mxu0 0.0
  %720 = vmatpush1.msra.mxu0 0.0
  %721 = vmatprep.subr.mxu0 0.0
  %722 = vmatpush1.msra.mxu0 0.0
  %723 = vmatprep.subr.mxu0 0.0
  %724 = vmatpush1.msra.mxu0 0.0
  %725 = vmatprep.subr.mxu0 0.0
  %726 = vmatpush1.msra.mxu0 0.0
  %727 = vmatprep.subr.mxu0 0.0
  %728 = vmatpush1.msra.mxu0 0.0
  %729 = vmatprep.subr.mxu0 0.0
  %730 = vmatpush1.msra.mxu0 0.0
  %731 = vmatprep.subr.mxu0 0.0
  %732 = vmatpush1.msra.mxu0 0.0
  %733 = vmatprep.subr.mxu0 0.0
  %734 = vmatpush1.msra.mxu0 0.0
  %735 = vmatprep.subr.mxu0 0.0
  %736 = vmatpush1.msra.mxu0 0.0
  %737 = vmatprep.subr.mxu0 0.0
  %738 = vmatpush1.msra.mxu0 0.0
  %739 = vmatprep.subr.mxu0 0.0
  %740 = vmatpush1.msra.mxu0 0.0
  %741 = vmatprep.subr.mxu0 0.0
  %742 = vmatpush1.msra.mxu0 0.0
  %743 = vmatprep.subr.mxu0 0.0
  %744 = vmatpush1.msra.mxu0 0.0
  %745 = vmatprep.subr.mxu0 0.0
  %746 = vmatpush1.msra.mxu0 0.0
  %747 = vmatprep.subr.mxu0 0.0
  %748 = vmatpush1.msra.mxu0 0.0
  %749 = vmatprep.subr.mxu0 0.0
  %750 = vmatpush1.msra.mxu0 0.0
  %751 = vmatprep.subr.mxu0 0.0
  %752 = vmatpush1.msra.mxu0 0.0
  %753 = vmatprep.subr.mxu0 0.0
  %754 = vmatpush1.msra.mxu0 0.0
  %755 = vmatprep.subr.mxu0 0.0
  %756 = vmatpush1.msra.mxu0 0.0
  %757 = vmatprep.subr.mxu0 0.0
  %758 = vmatpush1.msra.mxu0 0.0
  %759 = vmatprep.subr.mxu0 0.0
  %760 = vmatpush1.msra.mxu0 0.0
  %761 = vmatprep.subr.mxu0 0.0
  %762 = vmatpush1.msra.mxu0 0.0
  %763 = vmatprep.subr.mxu0 0.0
  %764 = vmatpush1.msra.mxu0 0.0
  %765 = vmatprep.subr.mxu0 0.0
  %766 = vmatpush1.msra.mxu0 0.0
  %767 = vmatprep.subr.mxu0 0.0
  %768 = vmatpush1.msra.mxu0 0.0
  %769 = vmatprep.mubr.f32.mxu0 0.0
  %770 = vmatmul.mubr.f32.gmra.mrb[0].mxu0 %v703
  %v771 = vpop.f32.mrb[0].mxu0
  %v772 = vadd.f32 0.0, %v771
  %v773 = vpop.f32.mrb[0].mxu0
  %774 = vdwg.mxu0
  %v775 = vadd.f32 %v163, %v772
  %v776 = vxor.u32 %v775, 2147483648
  %v777 = vmul.f32 %v776, 1.442695
  %v778 = vpow.pop %v777
  %v779 = vadd.f32 %v778, 1.0
  %v780 = vrcp.pop %v779
  %v781 = vmul.f32 1.0, %v780
  %v782 = vmul.f32 %v781, 2.0
  %v783 = vsub.f32 %v782, 1.0
  %v784 = vmul.f32 %v781, %v691
  %786 = vrot.lane.b32.xlu0 %v783, 32
  %v787 = vpop.permute.xlu0 %786
  %v789 = vmul.f32 %v781, %v787
  %791 = vrot.lane.b32.xlu0 %v789, 32
  %v792 = vpop.permute.xlu0 %791
  %v794 = vadd.f32 %v784, %v792
  %v795 = vtanh.pop %v794
  %797 = vrot.lane.b32.xlu0 %v795, 32
  %v798 = vpop.permute.xlu0 %797
  %v800 = vmul.f32 %v781, %v798
  %802 = vrot.lane.b32.xlu0 %v800, 64
  %v803 = vpop.permute.xlu0 %802
  %805 = vst.msk [vmem:[#allocation2 + $0x28] sm:$0xff] %vm182, %v803
  %v806 = vsel %vm182, %v803, 0
  %808 = vmatprep.subr.mxu0 0.0
  %809 = vmatpush1.msra.mxu0 %v176
  %810 = vmatprep.subr.mxu0 0.0
  %811 = vmatpush1.msra.mxu0 %v177
  %812 = vmatprep.subr.mxu0 0.0
  %813 = vmatpush1.msra.mxu0 %v178
  %814 = vmatprep.subr.mxu0 0.0
  %815 = vmatpush1.msra.mxu0 %v179
  %816 = vmatprep.subr.mxu0 0.0
  %817 = vmatpush1.msra.mxu0 0.0
  %818 = vmatprep.subr.mxu0 0.0
  %819 = vmatpush1.msra.mxu0 0.0
  %820 = vmatprep.subr.mxu0 0.0
  %821 = vmatpush1.msra.mxu0 0.0
  %822 = vmatprep.subr.mxu0 0.0
  %823 = vmatpush1.msra.mxu0 0.0
  %824 = vmatprep.subr.mxu0 0.0
  %825 = vmatpush1.msra.mxu0 0.0
  %826 = vmatprep.subr.mxu0 0.0
  %827 = vmatpush1.msra.mxu0 0.0
  %828 = vmatprep.subr.mxu0 0.0
  %829 = vmatpush1.msra.mxu0 0.0
  %830 = vmatprep.subr.mxu0 0.0
  %831 = vmatpush1.msra.mxu0 0.0
  %832 = vmatprep.subr.mxu0 0.0
  %833 = vmatpush1.msra.mxu0 0.0
  %834 = vmatprep.subr.mxu0 0.0
  %835 = vmatpush1.msra.mxu0 0.0
  %836 = vmatprep.subr.mxu0 0.0
  %837 = vmatpush1.msra.mxu0 0.0
  %838 = vmatprep.subr.mxu0 0.0
  %839 = vmatpush1.msra.mxu0 0.0
  %840 = vmatprep.subr.mxu0 0.0
  %841 = vmatpush1.msra.mxu0 0.0
  %842 = vmatprep.subr.mxu0 0.0
  %843 = vmatpush1.msra.mxu0 0.0
  %844 = vmatprep.subr.mxu0 0.0
  %845 = vmatpush1.msra.mxu0 0.0
  %846 = vmatprep.subr.mxu0 0.0
  %847 = vmatpush1.msra.mxu0 0.0
  %848 = vmatprep.subr.mxu0 0.0
  %849 = vmatpush1.msra.mxu0 0.0
  %850 = vmatprep.subr.mxu0 0.0
  %851 = vmatpush1.msra.mxu0 0.0
  %852 = vmatprep.subr.mxu0 0.0
  %853 = vmatpush1.msra.mxu0 0.0
  %854 = vmatprep.subr.mxu0 0.0
  %855 = vmatpush1.msra.mxu0 0.0
  %856 = vmatprep.subr.mxu0 0.0
  %857 = vmatpush1.msra.mxu0 0.0
  %858 = vmatprep.subr.mxu0 0.0
  %859 = vmatpush1.msra.mxu0 0.0
  %860 = vmatprep.subr.mxu0 0.0
  %861 = vmatpush1.msra.mxu0 0.0
  %862 = vmatprep.subr.mxu0 0.0
  %863 = vmatpush1.msra.mxu0 0.0
  %864 = vmatprep.subr.mxu0 0.0
  %865 = vmatpush1.msra.mxu0 0.0
  %866 = vmatprep.subr.mxu0 0.0
  %867 = vmatpush1.msra.mxu0 0.0
  %868 = vmatprep.subr.mxu0 0.0
  %869 = vmatpush1.msra.mxu0 0.0
  %870 = vmatprep.subr.mxu0 0.0
  %871 = vmatpush1.msra.mxu0 0.0
  %872 = vmatprep.mubr.f32.mxu0 0.0
  %873 = vmatmul.mubr.f32.gmra.mrb[0].mxu0 %v806
  %v874 = vpop.f32.mrb[0].mxu0
  %v875 = vadd.f32 0.0, %v874
  %v876 = vpop.f32.mrb[0].mxu0
  %877 = vdwg.mxu0
  %v878 = vadd.f32 %v168, %v875
  %v879 = vxor.u32 %v878, 2147483648
  %v880 = vmul.f32 %v879, 1.442695
  %v881 = vpow.pop %v880
  %v882 = vadd.f32 %v881, 1.0
  %v883 = vrcp.pop %v882
  %v884 = vmul.f32 1.0, %v883
  %v885 = vmul.f32 %v884, 2.0
  %v886 = vsub.f32 %v885, 1.0
  %v887 = vmul.f32 %v884, %v794
  %889 = vrot.lane.b32.xlu0 %v886, 32
  %v890 = vpop.permute.xlu0 %889
  %v892 = vmul.f32 %v884, %v890
  %894 = vrot.lane.b32.xlu0 %v892, 32
  %v895 = vpop.permute.xlu0 %894
  %v897 = vadd.f32 %v887, %v895
  %v898 = vtanh.pop %v897
  %900 = vrot.lane.b32.xlu0 %v898, 32
  %v901 = vpop.permute.xlu0 %900
  %v903 = vmul.f32 %v884, %v901
  %905 = vrot.lane.b32.xlu0 %v903, 64
  %v906 = vpop.permute.xlu0 %905
  %908 = vst.msk [vmem:[#allocation2 + $0x30] sm:$0xff] %vm182, %v906
  %v909 = vsel %vm182, %v906, 0
  %911 = vmatprep.subr.mxu0 0.0
  %912 = vmatpush1.msra.mxu0 %v176
  %913 = vmatprep.subr.mxu0 0.0
  %914 = vmatpush1.msra.mxu0 %v177
  %915 = vmatprep.subr.mxu0 0.0
  %916 = vmatpush1.msra.mxu0 %v178
  %917 = vmatprep.subr.mxu0 0.0
  %918 = vmatpush1.msra.mxu0 %v179
  %919 = vmatprep.subr.mxu0 0.0
  %920 = vmatpush1.msra.mxu0 0.0
  %921 = vmatprep.subr.mxu0 0.0
  %922 = vmatpush1.msra.mxu0 0.0
  %923 = vmatprep.subr.mxu0 0.0
  %924 = vmatpush1.msra.mxu0 0.0
  %925 = vmatprep.subr.mxu0 0.0
  %926 = vmatpush1.msra.mxu0 0.0
  %927 = vmatprep.subr.mxu0 0.0
  %928 = vmatpush1.msra.mxu0 0.0
  %929 = vmatprep.subr.mxu0 0.0
  %930 = vmatpush1.msra.mxu0 0.0
  %931 = vmatprep.subr.mxu0 0.0
  %932 = vmatpush1.msra.mxu0 0.0
  %933 = vmatprep.subr.mxu0 0.0
  %934 = vmatpush1.msra.mxu0 0.0
  %935 = vmatprep.subr.mxu0 0.0
  %936 = vmatpush1.msra.mxu0 0.0
  %937 = vmatprep.subr.mxu0 0.0
  %938 = vmatpush1.msra.mxu0 0.0
  %939 = vmatprep.subr.mxu0 0.0
  %940 = vmatpush1.msra.mxu0 0.0
  %941 = vmatprep.subr.mxu0 0.0
  %942 = vmatpush1.msra.mxu0 0.0
  %943 = vmatprep.subr.mxu0 0.0
  %944 = vmatpush1.msra.mxu0 0.0
  %945 = vmatprep.subr.mxu0 0.0
  %946 = vmatpush1.msra.mxu0 0.0
  %947 = vmatprep.subr.mxu0 0.0
  %948 = vmatpush1.msra.mxu0 0.0
  %949 = vmatprep.subr.mxu0 0.0
  %950 = vmatpush1.msra.mxu0 0.0
  %951 = vmatprep.subr.mxu0 0.0
  %952 = vmatpush1.msra.mxu0 0.0
  %953 = vmatprep.subr.mxu0 0.0
  %954 = vmatpush1.msra.mxu0 0.0
  %955 = vmatprep.subr.mxu0 0.0
  %956 = vmatpush1.msra.mxu0 0.0
  %957 = vmatprep.subr.mxu0 0.0
  %958 = vmatpush1.msra.mxu0 0.0
  %959 = vmatprep.subr.mxu0 0.0
  %960 = vmatpush1.msra.mxu0 0.0
  %961 = vmatprep.subr.mxu0 0.0
  %962 = vmatpush1.msra.mxu0 0.0
  %963 = vmatprep.subr.mxu0 0.0
  %964 = vmatpush1.msra.mxu0 0.0
  %965 = vmatprep.subr.mxu0 0.0
  %966 = vmatpush1.msra.mxu0 0.0
  %967 = vmatprep.subr.mxu0 0.0
  %968 = vmatpush1.msra.mxu0 0.0
  %969 = vmatprep.subr.mxu0 0.0
  %970 = vmatpush1.msra.mxu0 0.0
  %971 = vmatprep.subr.mxu0 0.0
  %972 = vmatpush1.msra.mxu0 0.0
  %973 = vmatprep.subr.mxu0 0.0
  %974 = vmatpush1.msra.mxu0 0.0
  %975 = vmatprep.mubr.f32.mxu0 0.0
  %976 = vmatmul.mubr.f32.gmra.mrb[0].mxu0 %v909
  %v977 = vpop.f32.mrb[0].mxu0
  %v978 = vadd.f32 0.0, %v977
  %v979 = vpop.f32.mrb[0].mxu0
  %980 = vdwg.mxu0
  %v981 = vadd.f32 %v173, %v978
  %v982 = vxor.u32 %v981, 2147483648
  %v983 = vmul.f32 %v982, 1.442695
  %v984 = vpow.pop %v983
  %v985 = vadd.f32 %v984, 1.0
  %v986 = vrcp.pop %v985
  %v987 = vmul.f32 1.0, %v986
  %v988 = vmul.f32 %v987, 2.0
  %v989 = vsub.f32 %v988, 1.0
  %v990 = vmul.f32 %v987, %v897
  %992 = vrot.lane.b32.xlu0 %v989, 32
  %v993 = vpop.permute.xlu0 %992
  %v995 = vmul.f32 %v987, %v993
  %997 = vrot.lane.b32.xlu0 %v995, 32
  %v998 = vpop.permute.xlu0 %997
  %v1000 = vadd.f32 %v990, %v998
  %v1001 = vtanh.pop %v1000
  %1003 = vrot.lane.b32.xlu0 %v1001, 32
  %v1004 = vpop.permute.xlu0 %1003
  %v1006 = vmul.f32 %v987, %v1004
  %1008 = vrot.lane.b32.xlu0 %v1006, 64
  %v1009 = vpop.permute.xlu0 %1008
  %1011 = vst.msk [vmem:[#allocation2 + $0x38] sm:$0xff] %vm182, %v1009
  %v1012 = vld [vmem:[#allocation2] sm:$0xff]
  %v1013 = vld [vmem:[#allocation2 + $0x8] sm:$0xff]
  %v1014 = vld [vmem:[#allocation2 + $0x10] sm:$0xff]
  %v1015 = vld [vmem:[#allocation2 + $0x18] sm:$0xff]
  %v1016 = vld [vmem:[#allocation2 + $0x20] sm:$0xff]
  %v1017 = vld [vmem:[#allocation2 + $0x28] sm:$0xff]
  %v1018 = vld [vmem:[#allocation2 + $0x30] sm:$0xff]
  %v1019 = vld [vmem:[#allocation2 + $0x38] sm:$0xff]
  %v1020 = vld [vmem:[%s5] sm:$0xff]
  %v1021 = vld [vmem:[%s5 + $0x8] sm:$0xff]
  %v1022 = vld [vmem:[%s5 + $0x10] sm:$0xff]
  %v1023 = vld [vmem:[%s5 + $0x18] sm:$0xff]
  %v1024 = vld [vmem:[%s7] sm:$0x1]
  %v1026 = vlaneseq
  %v1027 = vshrl.u32 %v1026, 7
  %v1028 = vsub.s32 0, %v1027
  %v1029 = vrot.slane %v1024, %v1028
  %v1032 = vsel %vm182, %v1012, 0
  %v1035 = vsel %vm182, %v1013, 0
  %v1038 = vsel %vm182, %v1014, 0
  %v1041 = vsel %vm182, %v1015, 0
  %v1044 = vsel %vm182, %v1016, 0
  %v1047 = vsel %vm182, %v1017, 0
  %v1050 = vsel %vm182, %v1018, 0
  %v1053 = vsel %vm182, %v1019, 0
  %1055 = vmatprep.subr.mxu0 0.0
  %1056 = vmatpush1.msra.mxu0 %v1020
  %1057 = vmatprep.subr.mxu0 0.0
  %1058 = vmatpush1.msra.mxu0 %v1021
  %1059 = vmatprep.subr.mxu0 0.0
  %1060 = vmatpush1.msra.mxu0 %v1022
  %1061 = vmatprep.subr.mxu0 0.0
  %1062 = vmatpush1.msra.mxu0 %v1023
  %1063 = vmatprep.subr.mxu0 0.0
  %1064 = vmatpush1.msra.mxu0 0.0
  %1065 = vmatprep.subr.mxu0 0.0
  %1066 = vmatpush1.msra.mxu0 0.0
  %1067 = vmatprep.subr.mxu0 0.0
  %1068 = vmatpush1.msra.mxu0 0.0
  %1069 = vmatprep.subr.mxu0 0.0
  %1070 = vmatpush1.msra.mxu0 0.0
  %1071 = vmatprep.subr.mxu0 0.0
  %1072 = vmatpush1.msra.mxu0 0.0
  %1073 = vmatprep.subr.mxu0 0.0
  %1074 = vmatpush1.msra.mxu0 0.0
  %1075 = vmatprep.subr.mxu0 0.0
  %1076 = vmatpush1.msra.mxu0 0.0
  %1077 = vmatprep.subr.mxu0 0.0
  %1078 = vmatpush1.msra.mxu0 0.0
  %1079 = vmatprep.subr.mxu0 0.0
  %1080 = vmatpush1.msra.mxu0 0.0
  %1081 = vmatprep.subr.mxu0 0.0
  %1082 = vmatpush1.msra.mxu0 0.0
  %1083 = vmatprep.subr.mxu0 0.0
  %1084 = vmatpush1.msra.mxu0 0.0
  %1085 = vmatprep.subr.mxu0 0.0
  %1086 = vmatpush1.msra.mxu0 0.0
  %1087 = vmatprep.subr.mxu0 0.0
  %1088 = vmatpush1.msra.mxu0 0.0
  %1089 = vmatprep.subr.mxu0 0.0
  %1090 = vmatpush1.msra.mxu0 0.0
  %1091 = vmatprep.subr.mxu0 0.0
  %1092 = vmatpush1.msra.mxu0 0.0
  %1093 = vmatprep.subr.mxu0 0.0
  %1094 = vmatpush1.msra.mxu0 0.0
  %1095 = vmatprep.subr.mxu0 0.0
  %1096 = vmatpush1.msra.mxu0 0.0
  %1097 = vmatprep.subr.mxu0 0.0
  %1098 = vmatpush1.msra.mxu0 0.0
  %1099 = vmatprep.subr.mxu0 0.0
  %1100 = vmatpush1.msra.mxu0 0.0
  %1101 = vmatprep.subr.mxu0 0.0
  %1102 = vmatpush1.msra.mxu0 0.0
  %1103 = vmatprep.subr.mxu0 0.0
  %1104 = vmatpush1.msra.mxu0 0.0
  %1105 = vmatprep.subr.mxu0 0.0
  %1106 = vmatpush1.msra.mxu0 0.0
  %1107 = vmatprep.subr.mxu0 0.0
  %1108 = vmatpush1.msra.mxu0 0.0
  %1109 = vmatprep.subr.mxu0 0.0
  %1110 = vmatpush1.msra.mxu0 0.0
  %1111 = vmatprep.subr.mxu0 0.0
  %1112 = vmatpush1.msra.mxu0 0.0
  %1113 = vmatprep.subr.mxu0 0.0
  %1114 = vmatpush1.msra.mxu0 0.0
  %1115 = vmatprep.subr.mxu0 0.0
  %1116 = vmatpush1.msra.mxu0 0.0
  %1117 = vmatprep.subr.mxu0 0.0
  %1118 = vmatpush1.msra.mxu0 0.0
  %1119 = vmatprep.mubr.f32.mxu0 0.0
  %1120 = vmatmul.mubr.f32.gmra.mrb[0].mxu0 %v1032
  %v1121 = vpop.f32.mrb[0].mxu0
  %v1122 = vadd.f32 %v1029, %v1121
  %v1123 = vpop.f32.mrb[0].mxu0
  %1124 = vmatprep.mubr.f32.mxu0 0.0
  %1125 = vmatmul.mubr.f32.gmra.mrb[0].mxu0 %v1035
  %v1126 = vpop.f32.mrb[0].mxu0
  %v1127 = vadd.f32 %v1029, %v1126
  %v1128 = vpop.f32.mrb[0].mxu0
  %1129 = vmatprep.mubr.f32.mxu0 0.0
  %1130 = vmatmul.mubr.f32.gmra.mrb[0].mxu0 %v1038
  %v1131 = vpop.f32.mrb[0].mxu0
  %v1132 = vadd.f32 %v1029, %v1131
  %v1133 = vpop.f32.mrb[0].mxu0
  %1134 = vmatprep.mubr.f32.mxu0 0.0
  %1135 = vmatmul.mubr.f32.gmra.mrb[0].mxu0 %v1041
  %v1136 = vpop.f32.mrb[0].mxu0
  %v1137 = vadd.f32 %v1029, %v1136
  %v1138 = vpop.f32.mrb[0].mxu0
  %1139 = vmatprep.mubr.f32.mxu0 0.0
  %1140 = vmatmul.mubr.f32.gmra.mrb[0].mxu0 %v1044
  %v1141 = vpop.f32.mrb[0].mxu0
  %v1142 = vadd.f32 %v1029, %v1141
  %v1143 = vpop.f32.mrb[0].mxu0
  %1144 = vmatprep.mubr.f32.mxu0 0.0
  %1145 = vmatmul.mubr.f32.gmra.mrb[0].mxu0 %v1047
  %v1146 = vpop.f32.mrb[0].mxu0
  %v1147 = vadd.f32 %v1029, %v1146
  %v1148 = vpop.f32.mrb[0].mxu0
  %1149 = vmatprep.mubr.f32.mxu0 0.0
  %1150 = vmatmul.mubr.f32.gmra.mrb[0].mxu0 %v1050
  %v1151 = vpop.f32.mrb[0].mxu0
  %v1152 = vadd.f32 %v1029, %v1151
  %v1153 = vpop.f32.mrb[0].mxu0
  %1154 = vmatprep.mubr.f32.mxu0 0.0
  %1155 = vmatmul.mubr.f32.gmra.mrb[0].mxu0 %v1053
  %v1156 = vpop.f32.mrb[0].mxu0
  %v1157 = vadd.f32 %v1029, %v1156
  %v1158 = vpop.f32.mrb[0].mxu0
  %1159 = vdwg.mxu0
  %v1160 = vld [vmem:[%s6] sm:$0xff]
  %v1161 = vld [vmem:[%s6 + $0x8] sm:$0xff]
  %v1162 = vld [vmem:[%s6 + $0x10] sm:$0xff]
  %v1163 = vld [vmem:[%s6 + $0x18] sm:$0xff]
  %1164 = vmatprep.subr.mxu0 0.0
  %1165 = vmatpush1.msra.mxu0 %v1160
  %1166 = vmatprep.subr.mxu0 0.0
  %1167 = vmatpush1.msra.mxu0 %v1161
  %1168 = vmatprep.subr.mxu0 0.0
  %1169 = vmatpush1.msra.mxu0 %v1162
  %1170 = vmatprep.subr.mxu0 0.0
  %1171 = vmatpush1.msra.mxu0 %v1163
  %1172 = vmatprep.subr.mxu0 0.0
  %1173 = vmatpush1.msra.mxu0 0.0
  %1174 = vmatprep.subr.mxu0 0.0
  %1175 = vmatpush1.msra.mxu0 0.0
  %1176 = vmatprep.subr.mxu0 0.0
  %1177 = vmatpush1.msra.mxu0 0.0
  %1178 = vmatprep.subr.mxu0 0.0
  %1179 = vmatpush1.msra.mxu0 0.0
  %1180 = vmatprep.subr.mxu0 0.0
  %1181 = vmatpush1.msra.mxu0 0.0
  %1182 = vmatprep.subr.mxu0 0.0
  %1183 = vmatpush1.msra.mxu0 0.0
  %1184 = vmatprep.subr.mxu0 0.0
  %1185 = vmatpush1.msra.mxu0 0.0
  %1186 = vmatprep.subr.mxu0 0.0
  %1187 = vmatpush1.msra.mxu0 0.0
  %1188 = vmatprep.subr.mxu0 0.0
  %1189 = vmatpush1.msra.mxu0 0.0
  %1190 = vmatprep.subr.mxu0 0.0
  %1191 = vmatpush1.msra.mxu0 0.0
  %1192 = vmatprep.subr.mxu0 0.0
  %1193 = vmatpush1.msra.mxu0 0.0
  %1194 = vmatprep.subr.mxu0 0.0
  %1195 = vmatpush1.msra.mxu0 0.0
  %1196 = vmatprep.subr.mxu0 0.0
  %1197 = vmatpush1.msra.mxu0 0.0
  %1198 = vmatprep.subr.mxu0 0.0
  %1199 = vmatpush1.msra.mxu0 0.0
  %1200 = vmatprep.subr.mxu0 0.0
  %1201 = vmatpush1.msra.mxu0 0.0
  %1202 = vmatprep.subr.mxu0 0.0
  %1203 = vmatpush1.msra.mxu0 0.0
  %1204 = vmatprep.subr.mxu0 0.0
  %1205 = vmatpush1.msra.mxu0 0.0
  %1206 = vmatprep.subr.mxu0 0.0
  %1207 = vmatpush1.msra.mxu0 0.0
  %1208 = vmatprep.subr.mxu0 0.0
  %1209 = vmatpush1.msra.mxu0 0.0
  %1210 = vmatprep.subr.mxu0 0.0
  %1211 = vmatpush1.msra.mxu0 0.0
  %1212 = vmatprep.subr.mxu0 0.0
  %1213 = vmatpush1.msra.mxu0 0.0
  %1214 = vmatprep.subr.mxu0 0.0
  %1215 = vmatpush1.msra.mxu0 0.0
  %1216 = vmatprep.subr.mxu0 0.0
  %1217 = vmatpush1.msra.mxu0 0.0
  %1218 = vmatprep.subr.mxu0 0.0
  %1219 = vmatpush1.msra.mxu0 0.0
  %1220 = vmatprep.subr.mxu0 0.0
  %1221 = vmatpush1.msra.mxu0 0.0
  %1222 = vmatprep.subr.mxu0 0.0
  %1223 = vmatpush1.msra.mxu0 0.0
  %1224 = vmatprep.subr.mxu0 0.0
  %1225 = vmatpush1.msra.mxu0 0.0
  %1226 = vmatprep.subr.mxu0 0.0
  %1227 = vmatpush1.msra.mxu0 0.0
  %1228 = vmatprep.mubr.f32.mxu0 0.0
  %1229 = vmatmul.mubr.f32.gmra.mrb[0].mxu0 %v1032
  %v1230 = vpop.f32.mrb[0].mxu0
  %v1231 = vadd.f32 0.0, %v1230
  %v1232 = vpop.f32.mrb[0].mxu0
  %1233 = vmatprep.mubr.f32.mxu0 0.0
  %1234 = vmatmul.mubr.f32.gmra.mrb[0].mxu0 %v1035
  %v1235 = vpop.f32.mrb[0].mxu0
  %v1236 = vadd.f32 0.0, %v1235
  %v1237 = vpop.f32.mrb[0].mxu0
  %1238 = vmatprep.mubr.f32.mxu0 0.0
  %1239 = vmatmul.mubr.f32.gmra.mrb[0].mxu0 %v1038
  %v1240 = vpop.f32.mrb[0].mxu0
  %v1241 = vadd.f32 0.0, %v1240
  %v1242 = vpop.f32.mrb[0].mxu0
  %1243 = vmatprep.mubr.f32.mxu0 0.0
  %1244 = vmatmul.mubr.f32.gmra.mrb[0].mxu0 %v1041
  %v1245 = vpop.f32.mrb[0].mxu0
  %v1246 = vadd.f32 0.0, %v1245
  %v1247 = vpop.f32.mrb[0].mxu0
  %1248 = vmatprep.mubr.f32.mxu0 0.0
  %1249 = vmatmul.mubr.f32.gmra.mrb[0].mxu0 %v1044
  %v1250 = vpop.f32.mrb[0].mxu0
  %v1251 = vadd.f32 0.0, %v1250
  %v1252 = vpop.f32.mrb[0].mxu0
  %1253 = vmatprep.mubr.f32.mxu0 0.0
  %1254 = vmatmul.mubr.f32.gmra.mrb[0].mxu0 %v1047
  %v1255 = vpop.f32.mrb[0].mxu0
  %v1256 = vadd.f32 0.0, %v1255
  %v1257 = vpop.f32.mrb[0].mxu0
  %1258 = vmatprep.mubr.f32.mxu0 0.0
  %1259 = vmatmul.mubr.f32.gmra.mrb[0].mxu0 %v1050
  %v1260 = vpop.f32.mrb[0].mxu0
  %v1261 = vadd.f32 0.0, %v1260
  %v1262 = vpop.f32.mrb[0].mxu0
  %1263 = vmatprep.mubr.f32.mxu0 0.0
  %1264 = vmatmul.mubr.f32.gmra.mrb[0].mxu0 %v1053
  %v1265 = vpop.f32.mrb[0].mxu0
  %v1266 = vadd.f32 0.0, %v1265
  %v1267 = vpop.f32.mrb[0].mxu0
  %1268 = vdwg.mxu0
  %1269 = vst [vmem:[%s8] sm:$0xff] %v1122
  %1270 = vst [vmem:[%s8 + $0x8] sm:$0xff] %v1127
  %1271 = vst [vmem:[%s8 + $0x10] sm:$0xff] %v1132
  %1272 = vst [vmem:[%s8 + $0x18] sm:$0xff] %v1137
  %1273 = vst [vmem:[%s8 + $0x20] sm:$0xff] %v1142
  %1274 = vst [vmem:[%s8 + $0x28] sm:$0xff] %v1147
  %1275 = vst [vmem:[%s8 + $0x30] sm:$0xff] %v1152
  %1276 = vst [vmem:[%s8 + $0x38] sm:$0xff] %v1157
  %v1277 = vld [vmem:[%s8 + $0x38] sm:$0xff]
  %v1278 = vadd.f32 %v1277, %v1231
  %1279 = vst [vmem:[%s8 + $0x38] sm:$0xff] %v1278
  %v1280 = vld [vmem:[%s8 + $0x30] sm:$0xff]
  %v1281 = vadd.f32 %v1280, %v1236
  %1282 = vst [vmem:[%s8 + $0x30] sm:$0xff] %v1281
  %v1283 = vld [vmem:[%s8 + $0x28] sm:$0xff]
  %v1284 = vadd.f32 %v1283, %v1241
  %1285 = vst [vmem:[%s8 + $0x28] sm:$0xff] %v1284
  %v1286 = vld [vmem:[%s8 + $0x20] sm:$0xff]
  %v1287 = vadd.f32 %v1286, %v1246
  %1288 = vst [vmem:[%s8 + $0x20] sm:$0xff] %v1287
  %v1289 = vld [vmem:[%s8 + $0x18] sm:$0xff]
  %v1290 = vadd.f32 %v1289, %v1251
  %1291 = vst [vmem:[%s8 + $0x18] sm:$0xff] %v1290
  %v1292 = vld [vmem:[%s8 + $0x10] sm:$0xff]
  %v1293 = vadd.f32 %v1292, %v1256
  %1294 = vst [vmem:[%s8 + $0x10] sm:$0xff] %v1293
  %v1295 = vld [vmem:[%s8 + $0x8] sm:$0xff]
  %v1296 = vadd.f32 %v1295, %v1261
  %1297 = vst [vmem:[%s8 + $0x8] sm:$0xff] %v1296
  %v1298 = vld [vmem:[%s8] sm:$0xff]
  %v1299 = vadd.f32 %v1298, %v1266
  %1300 = vst [vmem:[%s8] sm:$0xff] %v1299
  // Predicated region
  $region34: #{bilstm_forward.1} parent=0 // pred_check
    _
  $region35: #{bilstm_forward.1} parent=0 // pred_check_branch
    %1302 = sbr.rel (0) target = $region37
  $region36: #{bilstm_forward.1} parent=0 // pred_region
    _
  $region37: #{bilstm_forward.1} parent=0 // pred_fallthru
    _
  // Predicated region
  $region38: #{bilstm_forward.1} parent=0 // pred_check
    _
  $region39: #{bilstm_forward.1} parent=0 // pred_check_branch
    %1304 = sbr.rel (0) target = $region41
  $region40: #{bilstm_forward.1} parent=0 // pred_region
    _
  $region41: #{bilstm_forward.1} parent=0 // pred_fallthru
    _

</llo_original>
